<compile_context>
chip_gen: v6e
topology: v6e:2x2x1
jax: 0.10.0
libtpu: 0.0.40
codegen_flags: <defaults>
</compile_context>

<pallas_src>
import functools

import jax
import jax.numpy as jnp
from jax.experimental import pallas as pl
from jax.experimental.pallas import tpu as pltpu


def _round_up(x, m):
    return pl.cdiv(x, m) * m


def conv_bn_silu_kernel(x_ref, w_ref, shift_ref, o_ref, acc_ref):
    """One (tm, tn) output tile, accumulated over the K grid axis.

    x_ref:     (tm, tk)  bf16 im2col patch tile
    w_ref:     (tk, tn)  bf16 weight tile (BN scale already folded in)
    shift_ref: (1,  tn)  f32 folded BN shift
    o_ref:     (tm, tn)  output tile
    acc_ref:   (tm, tn)  f32 accumulator scratch (persists across the K axis)
    """
    kidx = pl.program_id(2)

    @pl.when(kidx == 0)
    def _():
        acc_ref[...] = jnp.zeros_like(acc_ref)

    acc_ref[...] += jnp.dot(x_ref[...], w_ref[...],
                            preferred_element_type=jnp.float32)

    @pl.when(kidx == pl.num_programs(2) - 1)
    def _():
        y = acc_ref[...] + shift_ref[...]                 # BN shift (scale folded into W)
        o_ref[...] = (y * jax.nn.sigmoid(y)).astype(o_ref.dtype)   # SiLU


def conv_bn_silu_matmul(x_patches, w_mat, bn_shift, *, out_dtype=jnp.float32,
                        tm=512, tn=None, tk=None):
    """SiLU((x_patches @ w_mat) + bn_shift) via a tiled Pallas matmul.

    x_patches: (M, K) bf16, w_mat: (K, C2) bf16, bn_shift: (1, C2) f32.
    Returns (M, C2) out_dtype.
    """
    M, K = x_patches.shape
    C2 = w_mat.shape[1]

    # Lane-dense output: pad C2 to a multiple of 128 (unmasked vector stores).
    c2_pad = _round_up(C2, 128)
    if tn is None:
        tn = 256 if c2_pad % 256 == 0 else 128
    tn = min(tn, c2_pad)

    # K reduction tile: multiple of 128, capped so tiles stay small in VMEM.
    if tk is None:
        tk = min(_round_up(K, 128), 1024)
    k_pad = _round_up(K, tk)

    # M tile: multiple of 8 (sublane), default 512.
    tm = min(tm, _round_up(M, 8))
    m_pad = _round_up(M, tm)

    # Pad once, inside the caller's jit, so XLA fuses it with the im2col gather
    # (avoids materializing a second full copy of the expanded X in HBM).
    if (m_pad, k_pad) != (M, K):
        x_patches = jnp.pad(x_patches, ((0, m_pad - M), (0, k_pad - K)))
    if (k_pad, c2_pad) != (K, C2):
        w_mat = jnp.pad(w_mat, ((0, k_pad - K), (0, c2_pad - C2)))
    if c2_pad != C2:
        bn_shift = jnp.pad(bn_shift, ((0, 0), (0, c2_pad - C2)))

    grid = (m_pad // tm, c2_pad // tn, k_pad // tk)

    out = pl.pallas_call(
        conv_bn_silu_kernel,
        out_shape=jax.ShapeDtypeStruct((m_pad, c2_pad), out_dtype),
        grid_spec=pltpu.PrefetchScalarGridSpec(
            num_scalar_prefetch=0,
            grid=grid,
            in_specs=[
                pl.BlockSpec((tm, tk), lambda i, j, kk: (i, kk)),
                pl.BlockSpec((tk, tn), lambda i, j, kk: (kk, j)),
                pl.BlockSpec((1, tn), lambda i, j, kk: (0, j)),
            ],
            out_specs=pl.BlockSpec((tm, tn), lambda i, j, kk: (i, j)),
            scratch_shapes=[pltpu.VMEM((tm, tn), jnp.float32)],
        ),
        compiler_params=pltpu.CompilerParams(
            # M and C2 tiles are independent -> megacore-shardable on v7x;
            # K is the accumulator axis -> must be "arbitrary" and last.
            dimension_semantics=("parallel", "parallel", "arbitrary"),
            # Tiles above use ~4 MiB double-buffered; raise the scoped limit
            # so larger tn/tk sweeps don't trip the 16 MiB v5e default.
            vmem_limit_bytes=48 * 1024 * 1024,
        ),
    )(x_patches, w_mat, bn_shift)
    return out[:M, :C2]


def im2col_nchw(x, k, s, p):
    """(N, C1, H, W) -> (N*Hout*Wout, C1*k*k); column order (c1, kh, kw)
    matches the PyTorch OIHW weight layout flattened as (C2, C1*k*k)."""
    N, C1, H, W = x.shape
    Hout = (H + 2 * p - k) // s + 1
    Wout = (W + 2 * p - k) // s + 1
    xp = jnp.pad(x, ((0, 0), (0, 0), (p, p), (p, p)))
    cols = []
    for dy in range(k):
        for dx in range(k):
            cols.append(xp[:, :, dy:dy + (Hout - 1) * s + 1:s,
                           dx:dx + (Wout - 1) * s + 1:s])
    # (k*k, N, C1, Hout, Wout) -> (N, Hout, Wout, C1, k*k)
    patches = jnp.stack(cols, axis=0).transpose(1, 3, 4, 2, 0)
    return patches.reshape(N * Hout * Wout, C1 * k * k), Hout, Wout


@functools.partial(jax.jit, static_argnames=("k", "s", "p", "eps", "out_dtype"))
def conv_module_forward(x, weight, bn_gamma, bn_beta, bn_mean, bn_var,
                        *, k, s, p=None, eps=1e-5, out_dtype=jnp.float32):
    """Conv.forward: Conv2d(no bias) -> BatchNorm2d(running stats) -> SiLU.

    x: (N, C1, H, W) NCHW, weight: (C2, C1, k, k) OIHW. Returns NCHW.
    """
    if p is None:
        p = k // 2                                      # autopad
    N, C1, H, W = x.shape
    C2 = weight.shape[0]

    x_patches, Hout, Wout = im2col_nchw(x, k, s, p)     # (M, C1*k*k)
    w_mat = weight.reshape(C2, C1 * k * k).T            # (K, C2)

    # Fold inference-mode BN into the GEMM: scale goes into the weight columns
    # (bf16), only the shift survives as an f32 epilogue add in the kernel.
    scale = bn_gamma * jax.lax.rsqrt(bn_var + eps)      # (C2,)
    shift = (bn_beta - bn_mean * scale).reshape(1, C2)  # (1, C2) f32

    x_bf16 = x_patches.astype(jnp.bfloat16)             # MXU-native inputs
    w_bf16 = (w_mat * scale[None, :]).astype(jnp.bfloat16)

    y = conv_bn_silu_matmul(x_bf16, w_bf16, shift, out_dtype=out_dtype)
    # (M, C2) -> (N, Hout, Wout, C2) -> NCHW
    return y.reshape(N, Hout, Wout, C2).transpose(0, 3, 1, 2)


def reference_forward_f32(x, weight, bn_gamma, bn_beta, bn_mean, bn_var,
                          *, k, s, p=None, eps=1e-5):
    """Pure f32 reference (conv -> BN(inference) -> SiLU)."""
    if p is None:
        p = k // 2
    conv = jax.lax.conv_general_dilated(
        x, weight, window_strides=(s, s), padding=[(p, p), (p, p)],
        dimension_numbers=("NCHW", "OIHW", "NCHW"))
    scale = (bn_gamma * jax.lax.rsqrt(bn_var + eps))[None, :, None, None]
    shift = (bn_beta - bn_mean * bn_gamma * jax.lax.rsqrt(bn_var + eps))[None, :, None, None]
    y = conv * scale + shift
    return y * jax.nn.sigmoid(y)


def reference_forward_bf16(x, weight, bn_gamma, bn_beta, bn_mean, bn_var,
                           *, k, s, p=None, eps=1e-5):
    """Precision-matched reference: bf16 inputs / folded scale / f32 accumulation."""
    if p is None:
        p = k // 2
    scale = bn_gamma * jax.lax.rsqrt(bn_var + eps)
    shift = (bn_beta - bn_mean * scale)[None, :, None, None]
    w_folded = (weight * scale[:, None, None, None]).astype(jnp.bfloat16)
    conv = jax.lax.conv_general_dilated(
        x.astype(jnp.bfloat16), w_folded, window_strides=(s, s),
        padding=[(p, p), (p, p)],
        dimension_numbers=("NCHW", "OIHW", "NCHW"),
        preferred_element_type=jnp.float32)
    y = conv + shift
    return y * jax.nn.sigmoid(y)


if __name__ == "__main__":
    # Small shapes consistent with the module: Conv(c1=4, c2=8, k=3, s=1).
    N, C1, H, W = 2, 4, 16, 16
    C2, K, S = 8, 3, 1

    key = jax.random.PRNGKey(0)
    kx, kw, kg, kb, km, kv = jax.random.split(key, 6)

    x = jax.random.normal(kx, (N, C1, H, W), dtype=jnp.float32)
    weight = jax.random.normal(kw, (C2, C1, K, K), dtype=jnp.float32) * 0.1
    bn_gamma = 1.0 + 0.1 * jax.random.normal(kg, (C2,), dtype=jnp.float32)
    bn_beta = 0.1 * jax.random.normal(kb, (C2,), dtype=jnp.float32)
    bn_mean = 0.1 * jax.random.normal(km, (C2,), dtype=jnp.float32)
    bn_var = jnp.abs(jax.random.normal(kv, (C2,), dtype=jnp.float32)) + 0.5

    out = conv_module_forward(x, weight, bn_gamma, bn_beta, bn_mean, bn_var, k=K, s=S)
    out = jax.block_until_ready(out)
    assert out.shape == (N, C2, H, W)

    # Tight check against a precision-matched reference (same bf16 inputs,
    # f32 accumulation) -- only accumulation-order differences remain.
    ref_bf16 = reference_forward_bf16(x, weight, bn_gamma, bn_beta, bn_mean,
                                      bn_var, k=K, s=S)
    assert jnp.allclose(out, ref_bf16, atol=1e-3, rtol=1e-3), \
        "mismatch vs bf16-matched reference"

    # Loose check against the full-f32 reference (bounds bf16 quantization).
    ref_f32 = reference_forward_f32(x, weight, bn_gamma, bn_beta, bn_mean,
                                    bn_var, k=K, s=S)
    assert jnp.allclose(out, ref_f32, atol=3e-2, rtol=3e-2), \
        "mismatch vs f32 reference"

    print("KERNEL_OK")
</pallas_src>

<mosaic_0001>
module attributes {stable_mosaic.version = 11 : i64} {
  func.func @conv_bn_silu_kernel(%arg0: i32, %arg1: i32, %arg2: i32, %arg3: memref<512x128xbf16, #tpu.memory_space<vmem>>, %arg4: memref<128x128xbf16, #tpu.memory_space<vmem>>, %arg5: memref<1x128xf32, #tpu.memory_space<vmem>>, %arg6: memref<512x128xf32, #tpu.memory_space<vmem>>, %arg7: memref<512x128xf32, #tpu.memory_space<vmem>>) attributes {dimension_semantics = [#tpu.dimension_semantics<parallel>, #tpu.dimension_semantics<parallel>, #tpu.dimension_semantics<arbitrary>], iteration_bounds = array<i64: 1, 1, 1>, scalar_prefetch = 0 : i64, scratch_operands = 1 : i64, tpu.core_type = #tpu.core_type<tc>, window_params = [{transform_indices = @transform_0, window_bounds = array<i64: 512, 128>}, {transform_indices = @transform_1, window_bounds = array<i64: 128, 128>}, {transform_indices = @transform_2, window_bounds = array<i64: 1, 128>}, {transform_indices = @transform_3, window_bounds = array<i64: 512, 128>}]} {
    %c0_i32 = arith.constant 0 : i32
    %0 = arith.cmpi eq, %arg2, %c0_i32 : i32
    %1 = arith.extui %0 : i1 to i32
    %c0_i32_0 = arith.constant 0 : i32
    %2 = arith.cmpi ne, %1, %c0_i32_0 : i32
    scf.if %2 {
      %cst_10 = arith.constant 0.000000e+00 : f32
      %12 = vector.broadcast %cst_10 : f32 to vector<512x128xf32>
      %c0_11 = arith.constant 0 : index
      %c0_12 = arith.constant 0 : index
      %13 = vector.load %arg7[%c0_11, %c0_12] : memref<512x128xf32, #tpu.memory_space<vmem>>, vector<512x128xf32>
      tpu.vector_store %arg7[%c0_11, %c0_12], %12 {strides = array<i32>} : memref<512x128xf32, #tpu.memory_space<vmem>>, vector<512x128xf32>,
    } else {
    }
    %c0 = arith.constant 0 : index
    %c0_1 = arith.constant 0 : index
    %3 = vector.load %arg7[%c0, %c0_1] : memref<512x128xf32, #tpu.memory_space<vmem>>, vector<512x128xf32>
    %c0_2 = arith.constant 0 : index
    %c0_3 = arith.constant 0 : index
    %4 = vector.load %arg3[%c0_2, %c0_3] : memref<512x128xbf16, #tpu.memory_space<vmem>>, vector<512x128xbf16>
    %c0_4 = arith.constant 0 : index
    %c0_5 = arith.constant 0 : index
    %5 = vector.load %arg4[%c0_4, %c0_5] : memref<128x128xbf16, #tpu.memory_space<vmem>>, vector<128x128xbf16>
    %cst = arith.constant dense<0.000000e+00> : vector<512x128xf32>
    %6 = tpu.matmul %4, %5, %cst {dimension_numbers = #tpu.dot_dimension_numbers<[1], [0], [0], [1], [0, 0, 1, 1], [], []>} : vector<512x128xbf16>, vector<128x128xbf16>, vector<512x128xf32> -> vector<512x128xf32>
    %7 = arith.addf %3, %6 : vector<512x128xf32>
    %c0_6 = arith.constant 0 : index
    %c0_7 = arith.constant 0 : index
    %8 = vector.load %arg7[%c0_6, %c0_7] : memref<512x128xf32, #tpu.memory_space<vmem>>, vector<512x128xf32>
    tpu.vector_store %arg7[%c0_6, %c0_7], %7 {strides = array<i32>} : memref<512x128xf32, #tpu.memory_space<vmem>>, vector<512x128xf32>,
    %c0_i32_8 = arith.constant 0 : i32
    %9 = arith.cmpi eq, %arg2, %c0_i32_8 : i32
    %10 = arith.extui %9 : i1 to i32
    %c0_i32_9 = arith.constant 0 : i32
    %11 = arith.cmpi ne, %10, %c0_i32_9 : i32
    scf.if %11 {
      %c0_10 = arith.constant 0 : index
      %c0_11 = arith.constant 0 : index
      %12 = vector.load %arg7[%c0_10, %c0_11] : memref<512x128xf32, #tpu.memory_space<vmem>>, vector<512x128xf32>
      %c0_12 = arith.constant 0 : index
      %c0_13 = arith.constant 0 : index
      %13 = vector.load %arg5[%c0_12, %c0_13] : memref<1x128xf32, #tpu.memory_space<vmem>>, vector<1x128xf32>
      %14 = vector.broadcast %13 : vector<1x128xf32> to vector<512x128xf32>
      %15 = arith.addf %12, %14 : vector<512x128xf32>
      %16 = arith.negf %15 : vector<512x128xf32>
      %17 = math.exp %16 : vector<512x128xf32>
      %cst_14 = arith.constant 1.000000e+00 : f32
      %18 = vector.broadcast %cst_14 : f32 to vector<512x128xf32>
      %19 = arith.addf %18, %17 : vector<512x128xf32>
      %20 = arith.divf %18, %19 : vector<512x128xf32>
      %21 = arith.mulf %15, %20 : vector<512x128xf32>
      %c0_15 = arith.constant 0 : index
      %c0_16 = arith.constant 0 : index
      %22 = vector.load %arg6[%c0_15, %c0_16] : memref<512x128xf32, #tpu.memory_space<vmem>>, vector<512x128xf32>
      tpu.vector_store %arg6[%c0_15, %c0_16], %21 {strides = array<i32>} : memref<512x128xf32, #tpu.memory_space<vmem>>, vector<512x128xf32>,
    } else {
    }
    return
  }
  func.func @transform_0(%arg0: i32, %arg1: i32, %arg2: i32) -> (i32, i32) {
    %c0_i32 = arith.constant 0 : i32
    return %arg0, %arg2 : i32, i32
  }
  func.func @transform_1(%arg0: i32, %arg1: i32, %arg2: i32) -> (i32, i32) {
    %c0_i32 = arith.constant 0 : i32
    return %arg2, %arg1 : i32, i32
  }
  func.func @transform_2(%arg0: i32, %arg1: i32, %arg2: i32) -> (i32, i32) {
    %c0_i32 = arith.constant 0 : i32
    %c0_i32_0 = arith.constant 0 : i32
    return %c0_i32, %arg1 : i32, i32
  }
  func.func @transform_3(%arg0: i32, %arg1: i32, %arg2: i32) -> (i32, i32) {
    %c0_i32 = arith.constant 0 : i32
    return %arg0, %arg1 : i32, i32
  }
}

</mosaic_0001>

<llo_original>
// kernel: conv_module_forward.1
$region0: #{conv_module_forward.1}
  #allocation0 [shape = 'u32[]', space=smem, size = 0x4, offset = 0x4, fixed_abs, tag = 'smem constant byte address 0x4 - core index']
  #allocation1 [shape = 'u32[144,128]{1,0:T(1,128)}', space=vmem, size = 0x12000, scoped, tag = 'internal scratch']
  #allocation2 [shape = 'f32[512,128]{1,0:T(8,128)}', space=vmem, size = 0x40000, scoped, tag = 'scratch operand']
  %s0 = inlined_call_operand.vmem [shape: bf16[512,128], index: 0, kind: input, shape index: {}]
  %s1 = inlined_call_operand.vmem [shape: bf16[128,128], index: 1, kind: input, shape index: {}]
  %s2 = inlined_call_operand.vmem [shape: f32[1,128], index: 2, kind: input, shape index: {}]
  %s3 = inlined_call_operand.vmem [shape: f32[512,128], index: 3, kind: output, shape index: {}]
  %s4 = sld [smem:[#allocation0]]
  $region30: #{conv_module_forward.1} parent=0
    _
  %s6 = ssub.s32 1, %s4
  %s7 = scalar_select 0, %s6, %s4
  // Predicated region
  $region2: #{conv_module_forward.1} parent=0 // pred_check
    _
  $region3: #{conv_module_forward.1} parent=0 // pred_check_branch
    %9 = sbr.rel (0) target = $region5
  $region4: #{conv_module_forward.1} parent=0 // pred_region
    _
  $region5: #{conv_module_forward.1} parent=0 // pred_fallthru
    _
  // Predicated region
  $region6: #{conv_module_forward.1} parent=0 // pred_check
    _
  $region7: #{conv_module_forward.1} parent=0 // pred_check_branch
    %11 = sbr.rel (0) target = $region9
  $region8: #{conv_module_forward.1} parent=0 // pred_region
    _
  $region9: #{conv_module_forward.1} parent=0 // pred_fallthru
    _
  // Predicated region
  $region10: #{conv_module_forward.1} parent=0 // pred_check
    _
  $region11: #{conv_module_forward.1} parent=0 // pred_check_branch
    %13 = sbr.rel (0) target = $region13
  $region12: #{conv_module_forward.1} parent=0 // pred_region
    _
  $region13: #{conv_module_forward.1} parent=0 // pred_fallthru
    _
  %p15 = scmp.eq.s32.totalorder 0, 0
  // Predicated region
  $region14: #{conv_module_forward.1} parent=0 // pred_check
    %p16 = pneg %p15
  $region15: #{conv_module_forward.1} parent=0 // pred_check_branch
    %18 = sbr.rel (%p16) target = $region17
  $region16: #{conv_module_forward.1} parent=0 // pred_region
    %19 = vst [vmem:[#allocation2] sm:$0xff] 0.0
    %20 = vst [vmem:[#allocation2 + $0x8] sm:$0xff] 0.0
    %21 = vst [vmem:[#allocation2 + $0x10] sm:$0xff] 0.0
    %22 = vst [vmem:[#allocation2 + $0x18] sm:$0xff] 0.0
    %23 = vst [vmem:[#allocation2 + $0x20] sm:$0xff] 0.0
    %24 = vst [vmem:[#allocation2 + $0x28] sm:$0xff] 0.0
    %25 = vst [vmem:[#allocation2 + $0x30] sm:$0xff] 0.0
    %26 = vst [vmem:[#allocation2 + $0x38] sm:$0xff] 0.0
    %27 = vst [vmem:[#allocation2 + $0x40] sm:$0xff] 0.0
    %28 = vst [vmem:[#allocation2 + $0x48] sm:$0xff] 0.0
    %29 = vst [vmem:[#allocation2 + $0x50] sm:$0xff] 0.0
    %30 = vst [vmem:[#allocation2 + $0x58] sm:$0xff] 0.0
    %31 = vst [vmem:[#allocation2 + $0x60] sm:$0xff] 0.0
    %32 = vst [vmem:[#allocation2 + $0x68] sm:$0xff] 0.0
    %33 = vst [vmem:[#allocation2 + $0x70] sm:$0xff] 0.0
    %34 = vst [vmem:[#allocation2 + $0x78] sm:$0xff] 0.0
    %35 = vst [vmem:[#allocation2 + $0x80] sm:$0xff] 0.0
    %36 = vst [vmem:[#allocation2 + $0x88] sm:$0xff] 0.0
    %37 = vst [vmem:[#allocation2 + $0x90] sm:$0xff] 0.0
    %38 = vst [vmem:[#allocation2 + $0x98] sm:$0xff] 0.0
    %39 = vst [vmem:[#allocation2 + $0xa0] sm:$0xff] 0.0
    %40 = vst [vmem:[#allocation2 + $0xa8] sm:$0xff] 0.0
    %41 = vst [vmem:[#allocation2 + $0xb0] sm:$0xff] 0.0
    %42 = vst [vmem:[#allocation2 + $0xb8] sm:$0xff] 0.0
    %43 = vst [vmem:[#allocation2 + $0xc0] sm:$0xff] 0.0
    %44 = vst [vmem:[#allocation2 + $0xc8] sm:$0xff] 0.0
    %45 = vst [vmem:[#allocation2 + $0xd0] sm:$0xff] 0.0
    %46 = vst [vmem:[#allocation2 + $0xd8] sm:$0xff] 0.0
    %47 = vst [vmem:[#allocation2 + $0xe0] sm:$0xff] 0.0
    %48 = vst [vmem:[#allocation2 + $0xe8] sm:$0xff] 0.0
    %49 = vst [vmem:[#allocation2 + $0xf0] sm:$0xff] 0.0
    %50 = vst [vmem:[#allocation2 + $0xf8] sm:$0xff] 0.0
    %51 = vst [vmem:[#allocation2 + $0x100] sm:$0xff] 0.0
    %52 = vst [vmem:[#allocation2 + $0x108] sm:$0xff] 0.0
    %53 = vst [vmem:[#allocation2 + $0x110] sm:$0xff] 0.0
    %54 = vst [vmem:[#allocation2 + $0x118] sm:$0xff] 0.0
    %55 = vst [vmem:[#allocation2 + $0x120] sm:$0xff] 0.0
    %56 = vst [vmem:[#allocation2 + $0x128] sm:$0xff] 0.0
    %57 = vst [vmem:[#allocation2 + $0x130] sm:$0xff] 0.0
    %58 = vst [vmem:[#allocation2 + $0x138] sm:$0xff] 0.0
    %59 = vst [vmem:[#allocation2 + $0x140] sm:$0xff] 0.0
    %60 = vst [vmem:[#allocation2 + $0x148] sm:$0xff] 0.0
    %61 = vst [vmem:[#allocation2 + $0x150] sm:$0xff] 0.0
    %62 = vst [vmem:[#allocation2 + $0x158] sm:$0xff] 0.0
    %63 = vst [vmem:[#allocation2 + $0x160] sm:$0xff] 0.0
    %64 = vst [vmem:[#allocation2 + $0x168] sm:$0xff] 0.0
    %65 = vst [vmem:[#allocation2 + $0x170] sm:$0xff] 0.0
    %66 = vst [vmem:[#allocation2 + $0x178] sm:$0xff] 0.0
    %67 = vst [vmem:[#allocation2 + $0x180] sm:$0xff] 0.0
    %68 = vst [vmem:[#allocation2 + $0x188] sm:$0xff] 0.0
    %69 = vst [vmem:[#allocation2 + $0x190] sm:$0xff] 0.0
    %70 = vst [vmem:[#allocation2 + $0x198] sm:$0xff] 0.0
    %71 = vst [vmem:[#allocation2 + $0x1a0] sm:$0xff] 0.0
    %72 = vst [vmem:[#allocation2 + $0x1a8] sm:$0xff] 0.0
    %73 = vst [vmem:[#allocation2 + $0x1b0] sm:$0xff] 0.0
    %74 = vst [vmem:[#allocation2 + $0x1b8] sm:$0xff] 0.0
    %75 = vst [vmem:[#allocation2 + $0x1c0] sm:$0xff] 0.0
    %76 = vst [vmem:[#allocation2 + $0x1c8] sm:$0xff] 0.0
    %77 = vst [vmem:[#allocation2 + $0x1d0] sm:$0xff] 0.0
    %78 = vst [vmem:[#allocation2 + $0x1d8] sm:$0xff] 0.0
    %79 = vst [vmem:[#allocation2 + $0x1e0] sm:$0xff] 0.0
    %80 = vst [vmem:[#allocation2 + $0x1e8] sm:$0xff] 0.0
    %81 = vst [vmem:[#allocation2 + $0x1f0] sm:$0xff] 0.0
    %82 = vst [vmem:[#allocation2 + $0x1f8] sm:$0xff] 0.0
  $region17: #{conv_module_forward.1} parent=0 // pred_fallthru
    _
  %v83 = vld [vmem:[#allocation2] sm:$0xff]
  %v84 = vld [vmem:[#allocation2 + $0x8] sm:$0xff]
  %v85 = vld [vmem:[#allocation2 + $0x10] sm:$0xff]
  %v86 = vld [vmem:[#allocation2 + $0x18] sm:$0xff]
  %v87 = vld [vmem:[#allocation2 + $0x20] sm:$0xff]
  %v88 = vld [vmem:[#allocation2 + $0x28] sm:$0xff]
  %v89 = vld [vmem:[#allocation2 + $0x30] sm:$0xff]
  %v90 = vld [vmem:[#allocation2 + $0x38] sm:$0xff]
  %v91 = vld [vmem:[#allocation2 + $0x40] sm:$0xff]
  %v92 = vld [vmem:[#allocation2 + $0x48] sm:$0xff]
  %v93 = vld [vmem:[#allocation2 + $0x50] sm:$0xff]
  %v94 = vld [vmem:[#allocation2 + $0x58] sm:$0xff]
  %v95 = vld [vmem:[#allocation2 + $0x60] sm:$0xff]
  %v96 = vld [vmem:[#allocation2 + $0x68] sm:$0xff]
  %v97 = vld [vmem:[#allocation2 + $0x70] sm:$0xff]
  %v98 = vld [vmem:[#allocation2 + $0x78] sm:$0xff]
  %v99 = vld [vmem:[#allocation2 + $0x80] sm:$0xff]
  %v100 = vld [vmem:[#allocation2 + $0x88] sm:$0xff]
  %v101 = vld [vmem:[#allocation2 + $0x90] sm:$0xff]
  %v102 = vld [vmem:[#allocation2 + $0x98] sm:$0xff]
  %v103 = vld [vmem:[#allocation2 + $0xa0] sm:$0xff]
  %v104 = vld [vmem:[#allocation2 + $0xa8] sm:$0xff]
  %v105 = vld [vmem:[#allocation2 + $0xb0] sm:$0xff]
  %v106 = vld [vmem:[#allocation2 + $0xb8] sm:$0xff]
  %v107 = vld [vmem:[#allocation2 + $0xc0] sm:$0xff]
  %v108 = vld [vmem:[#allocation2 + $0xc8] sm:$0xff]
  %v109 = vld [vmem:[#allocation2 + $0xd0] sm:$0xff]
  %v110 = vld [vmem:[#allocation2 + $0xd8] sm:$0xff]
  %v111 = vld [vmem:[#allocation2 + $0xe0] sm:$0xff]
  %v112 = vld [vmem:[#allocation2 + $0xe8] sm:$0xff]
  %v113 = vld [vmem:[#allocation2 + $0xf0] sm:$0xff]
  %v114 = vld [vmem:[#allocation2 + $0xf8] sm:$0xff]
  %v115 = vld [vmem:[#allocation2 + $0x100] sm:$0xff]
  %v116 = vld [vmem:[#allocation2 + $0x108] sm:$0xff]
  %v117 = vld [vmem:[#allocation2 + $0x110] sm:$0xff]
  %v118 = vld [vmem:[#allocation2 + $0x118] sm:$0xff]
  %v119 = vld [vmem:[#allocation2 + $0x120] sm:$0xff]
  %v120 = vld [vmem:[#allocation2 + $0x128] sm:$0xff]
  %v121 = vld [vmem:[#allocation2 + $0x130] sm:$0xff]
  %v122 = vld [vmem:[#allocation2 + $0x138] sm:$0xff]
  %v123 = vld [vmem:[#allocation2 + $0x140] sm:$0xff]
  %v124 = vld [vmem:[#allocation2 + $0x148] sm:$0xff]
  %v125 = vld [vmem:[#allocation2 + $0x150] sm:$0xff]
  %v126 = vld [vmem:[#allocation2 + $0x158] sm:$0xff]
  %v127 = vld [vmem:[#allocation2 + $0x160] sm:$0xff]
  %v128 = vld [vmem:[#allocation2 + $0x168] sm:$0xff]
  %v129 = vld [vmem:[#allocation2 + $0x170] sm:$0xff]
  %v130 = vld [vmem:[#allocation2 + $0x178] sm:$0xff]
  %v131 = vld [vmem:[#allocation2 + $0x180] sm:$0xff]
  %v132 = vld [vmem:[#allocation2 + $0x188] sm:$0xff]
  %v133 = vld [vmem:[#allocation2 + $0x190] sm:$0xff]
  %v134 = vld [vmem:[#allocation2 + $0x198] sm:$0xff]
  %v135 = vld [vmem:[#allocation2 + $0x1a0] sm:$0xff]
  %v136 = vld [vmem:[#allocation2 + $0x1a8] sm:$0xff]
  %v137 = vld [vmem:[#allocation2 + $0x1b0] sm:$0xff]
  %v138 = vld [vmem:[#allocation2 + $0x1b8] sm:$0xff]
  %v139 = vld [vmem:[#allocation2 + $0x1c0] sm:$0xff]
  %v140 = vld [vmem:[#allocation2 + $0x1c8] sm:$0xff]
  %v141 = vld [vmem:[#allocation2 + $0x1d0] sm:$0xff]
  %v142 = vld [vmem:[#allocation2 + $0x1d8] sm:$0xff]
  %v143 = vld [vmem:[#allocation2 + $0x1e0] sm:$0xff]
  %v144 = vld [vmem:[#allocation2 + $0x1e8] sm:$0xff]
  %v145 = vld [vmem:[#allocation2 + $0x1f0] sm:$0xff]
  %v146 = vld [vmem:[#allocation2 + $0x1f8] sm:$0xff]
  %v147 = vld [vmem:[%s0] sm:$0xf]
  %v148 = vld [vmem:[%s0 + $0x4] sm:$0xf]
  %v149 = vld [vmem:[%s0 + $0x8] sm:$0xf]
  %v150 = vld [vmem:[%s0 + $0xc] sm:$0xf]
  %v151 = vld [vmem:[%s0 + $0x10] sm:$0xf]
  %v152 = vld [vmem:[%s0 + $0x14] sm:$0xf]
  %v153 = vld [vmem:[%s0 + $0x18] sm:$0xf]
  %v154 = vld [vmem:[%s0 + $0x1c] sm:$0xf]
  %v155 = vld [vmem:[%s0 + $0x20] sm:$0xf]
  %v156 = vld [vmem:[%s0 + $0x24] sm:$0xf]
  %v157 = vld [vmem:[%s0 + $0x28] sm:$0xf]
  %v158 = vld [vmem:[%s0 + $0x2c] sm:$0xf]
  %v159 = vld [vmem:[%s0 + $0x30] sm:$0xf]
  %v160 = vld [vmem:[%s0 + $0x34] sm:$0xf]
  %v161 = vld [vmem:[%s0 + $0x38] sm:$0xf]
  %v162 = vld [vmem:[%s0 + $0x3c] sm:$0xf]
  %v163 = vld [vmem:[%s0 + $0x40] sm:$0xf]
  %v164 = vld [vmem:[%s0 + $0x44] sm:$0xf]
  %v165 = vld [vmem:[%s0 + $0x48] sm:$0xf]
  %v166 = vld [vmem:[%s0 + $0x4c] sm:$0xf]
  %v167 = vld [vmem:[%s0 + $0x50] sm:$0xf]
  %v168 = vld [vmem:[%s0 + $0x54] sm:$0xf]
  %v169 = vld [vmem:[%s0 + $0x58] sm:$0xf]
  %v170 = vld [vmem:[%s0 + $0x5c] sm:$0xf]
  %v171 = vld [vmem:[%s0 + $0x60] sm:$0xf]
  %v172 = vld [vmem:[%s0 + $0x64] sm:$0xf]
  %v173 = vld [vmem:[%s0 + $0x68] sm:$0xf]
  %v174 = vld [vmem:[%s0 + $0x6c] sm:$0xf]
  %v175 = vld [vmem:[%s0 + $0x70] sm:$0xf]
  %v176 = vld [vmem:[%s0 + $0x74] sm:$0xf]
  %v177 = vld [vmem:[%s0 + $0x78] sm:$0xf]
  %v178 = vld [vmem:[%s0 + $0x7c] sm:$0xf]
  %v179 = vld [vmem:[%s0 + $0x80] sm:$0xf]
  %v180 = vld [vmem:[%s0 + $0x84] sm:$0xf]
  %v181 = vld [vmem:[%s0 + $0x88] sm:$0xf]
  %v182 = vld [vmem:[%s0 + $0x8c] sm:$0xf]
  %v183 = vld [vmem:[%s0 + $0x90] sm:$0xf]
  %v184 = vld [vmem:[%s0 + $0x94] sm:$0xf]
  %v185 = vld [vmem:[%s0 + $0x98] sm:$0xf]
  %v186 = vld [vmem:[%s0 + $0x9c] sm:$0xf]
  %v187 = vld [vmem:[%s0 + $0xa0] sm:$0xf]
  %v188 = vld [vmem:[%s0 + $0xa4] sm:$0xf]
  %v189 = vld [vmem:[%s0 + $0xa8] sm:$0xf]
  %v190 = vld [vmem:[%s0 + $0xac] sm:$0xf]
  %v191 = vld [vmem:[%s0 + $0xb0] sm:$0xf]
  %v192 = vld [vmem:[%s0 + $0xb4] sm:$0xf]
  %v193 = vld [vmem:[%s0 + $0xb8] sm:$0xf]
  %v194 = vld [vmem:[%s0 + $0xbc] sm:$0xf]
  %v195 = vld [vmem:[%s0 + $0xc0] sm:$0xf]
  %v196 = vld [vmem:[%s0 + $0xc4] sm:$0xf]
  %v197 = vld [vmem:[%s0 + $0xc8] sm:$0xf]
  %v198 = vld [vmem:[%s0 + $0xcc] sm:$0xf]
  %v199 = vld [vmem:[%s0 + $0xd0] sm:$0xf]
  %v200 = vld [vmem:[%s0 + $0xd4] sm:$0xf]
  %v201 = vld [vmem:[%s0 + $0xd8] sm:$0xf]
  %v202 = vld [vmem:[%s0 + $0xdc] sm:$0xf]
  %v203 = vld [vmem:[%s0 + $0xe0] sm:$0xf]
  %v204 = vld [vmem:[%s0 + $0xe4] sm:$0xf]
  %v205 = vld [vmem:[%s0 + $0xe8] sm:$0xf]
  %v206 = vld [vmem:[%s0 + $0xec] sm:$0xf]
  %v207 = vld [vmem:[%s0 + $0xf0] sm:$0xf]
  %v208 = vld [vmem:[%s0 + $0xf4] sm:$0xf]
  %v209 = vld [vmem:[%s0 + $0xf8] sm:$0xf]
  %v210 = vld [vmem:[%s0 + $0xfc] sm:$0xf]
  %v211 = vld [vmem:[%s1] sm:$0xf]
  %v212 = vld [vmem:[%s1 + $0x4] sm:$0xf]
  %v213 = vld [vmem:[%s1 + $0x8] sm:$0xf]
  %v214 = vld [vmem:[%s1 + $0xc] sm:$0xf]
  %v215 = vld [vmem:[%s1 + $0x10] sm:$0xf]
  %v216 = vld [vmem:[%s1 + $0x14] sm:$0xf]
  %v217 = vld [vmem:[%s1 + $0x18] sm:$0xf]
  %v218 = vld [vmem:[%s1 + $0x1c] sm:$0xf]
  %v219 = vld [vmem:[%s1 + $0x20] sm:$0xf]
  %v220 = vld [vmem:[%s1 + $0x24] sm:$0xf]
  %v221 = vld [vmem:[%s1 + $0x28] sm:$0xf]
  %v222 = vld [vmem:[%s1 + $0x2c] sm:$0xf]
  %v223 = vld [vmem:[%s1 + $0x30] sm:$0xf]
  %v224 = vld [vmem:[%s1 + $0x34] sm:$0xf]
  %v225 = vld [vmem:[%s1 + $0x38] sm:$0xf]
  %v226 = vld [vmem:[%s1 + $0x3c] sm:$0xf]
  %v291 = vunpack.c.l.b16 %v147
  %v292 = vunpack.c.l.b16 %v148
  %v293 = vunpack.c.l.b16 %v149
  %v294 = vunpack.c.l.b16 %v150
  %v295 = vunpack.c.l.b16 %v151
  %v296 = vunpack.c.l.b16 %v152
  %v297 = vunpack.c.l.b16 %v153
  %v298 = vunpack.c.l.b16 %v154
  %v299 = vunpack.c.l.b16 %v155
  %v300 = vunpack.c.l.b16 %v156
  %v301 = vunpack.c.l.b16 %v157
  %v302 = vunpack.c.l.b16 %v158
  %v303 = vunpack.c.l.b16 %v159
  %v304 = vunpack.c.l.b16 %v160
  %v305 = vunpack.c.l.b16 %v161
  %v306 = vunpack.c.l.b16 %v162
  %v307 = vunpack.c.l.b16 %v163
  %v308 = vunpack.c.l.b16 %v164
  %v309 = vunpack.c.l.b16 %v165
  %v310 = vunpack.c.l.b16 %v166
  %v311 = vunpack.c.l.b16 %v167
  %v312 = vunpack.c.l.b16 %v168
  %v313 = vunpack.c.l.b16 %v169
  %v314 = vunpack.c.l.b16 %v170
  %v315 = vunpack.c.l.b16 %v171
  %v316 = vunpack.c.l.b16 %v172
  %v317 = vunpack.c.l.b16 %v173
  %v318 = vunpack.c.l.b16 %v174
  %v319 = vunpack.c.l.b16 %v175
  %v320 = vunpack.c.l.b16 %v176
  %v321 = vunpack.c.l.b16 %v177
  %v322 = vunpack.c.l.b16 %v178
  %v323 = vunpack.c.l.b16 %v179
  %v324 = vunpack.c.l.b16 %v180
  %v325 = vunpack.c.l.b16 %v181
  %v326 = vunpack.c.l.b16 %v182
  %v327 = vunpack.c.l.b16 %v183
  %v328 = vunpack.c.l.b16 %v184
  %v329 = vunpack.c.l.b16 %v185
  %v330 = vunpack.c.l.b16 %v186
  %v331 = vunpack.c.l.b16 %v187
  %v332 = vunpack.c.l.b16 %v188
  %v333 = vunpack.c.l.b16 %v189
  %v334 = vunpack.c.l.b16 %v190
  %v335 = vunpack.c.l.b16 %v191
  %v336 = vunpack.c.l.b16 %v192
  %v337 = vunpack.c.l.b16 %v193
  %v338 = vunpack.c.l.b16 %v194
  %v339 = vunpack.c.l.b16 %v195
  %v340 = vunpack.c.l.b16 %v196
  %v341 = vunpack.c.l.b16 %v197
  %v342 = vunpack.c.l.b16 %v198
  %v343 = vunpack.c.l.b16 %v199
  %v344 = vunpack.c.l.b16 %v200
  %v345 = vunpack.c.l.b16 %v201
  %v346 = vunpack.c.l.b16 %v202
  %v347 = vunpack.c.l.b16 %v203
  %v348 = vunpack.c.l.b16 %v204
  %v349 = vunpack.c.l.b16 %v205
  %v350 = vunpack.c.l.b16 %v206
  %v351 = vunpack.c.l.b16 %v207
  %v352 = vunpack.c.l.b16 %v208
  %v353 = vunpack.c.l.b16 %v209
  %v354 = vunpack.c.l.b16 %v210
  %v355 = vpack.c.b16 %v292, %v291
  %v356 = vpack.c.b16 %v294, %v293
  %v357 = vpack.c.b16 %v296, %v295
  %v358 = vpack.c.b16 %v298, %v297
  %v359 = vpack.c.b16 %v300, %v299
  %v360 = vpack.c.b16 %v302, %v301
  %v361 = vpack.c.b16 %v304, %v303
  %v362 = vpack.c.b16 %v306, %v305
  %v363 = vpack.c.b16 %v308, %v307
  %v364 = vpack.c.b16 %v310, %v309
  %v365 = vpack.c.b16 %v312, %v311
  %v366 = vpack.c.b16 %v314, %v313
  %v367 = vpack.c.b16 %v316, %v315
  %v368 = vpack.c.b16 %v318, %v317
  %v369 = vpack.c.b16 %v320, %v319
  %v370 = vpack.c.b16 %v322, %v321
  %v371 = vpack.c.b16 %v324, %v323
  %v372 = vpack.c.b16 %v326, %v325
  %v373 = vpack.c.b16 %v328, %v327
  %v374 = vpack.c.b16 %v330, %v329
  %v375 = vpack.c.b16 %v332, %v331
  %v376 = vpack.c.b16 %v334, %v333
  %v377 = vpack.c.b16 %v336, %v335
  %v378 = vpack.c.b16 %v338, %v337
  %v379 = vpack.c.b16 %v340, %v339
  %v380 = vpack.c.b16 %v342, %v341
  %v381 = vpack.c.b16 %v344, %v343
  %v382 = vpack.c.b16 %v346, %v345
  %v383 = vpack.c.b16 %v348, %v347
  %v384 = vpack.c.b16 %v350, %v349
  %v385 = vpack.c.b16 %v352, %v351
  %v386 = vpack.c.b16 %v354, %v353
  %v435 = vunpack.c.l.b16 %v211
  %v436 = vunpack.c.l.b16 %v212
  %v437 = vunpack.c.l.b16 %v213
  %v438 = vunpack.c.l.b16 %v214
  %v439 = vunpack.c.l.b16 %v215
  %v440 = vunpack.c.l.b16 %v216
  %v441 = vunpack.c.l.b16 %v217
  %v442 = vunpack.c.l.b16 %v218
  %v443 = vunpack.c.l.b16 %v219
  %v444 = vunpack.c.l.b16 %v220
  %v445 = vunpack.c.l.b16 %v221
  %v446 = vunpack.c.l.b16 %v222
  %v447 = vunpack.c.l.b16 %v223
  %v448 = vunpack.c.l.b16 %v224
  %v449 = vunpack.c.l.b16 %v225
  %v450 = vunpack.c.l.b16 %v226
  %v451 = vpack.c.b16 %v436, %v435
  %v452 = vpack.c.b16 %v438, %v437
  %v453 = vpack.c.b16 %v440, %v439
  %v454 = vpack.c.b16 %v442, %v441
  %v455 = vpack.c.b16 %v444, %v443
  %v456 = vpack.c.b16 %v446, %v445
  %v457 = vpack.c.b16 %v448, %v447
  %v458 = vpack.c.b16 %v450, %v449
  %467 = vmatprep.subr.bf16.mxu0 0
  %468 = vmatpush1.bf16.msra.mxu0 %v458
  %469 = vmatprep.subr.bf16.mxu0 0
  %470 = vmatpush1.bf16.msra.mxu0 %v457
  %471 = vmatprep.subr.bf16.mxu0 0
  %472 = vmatpush1.bf16.msra.mxu0 %v456
  %473 = vmatprep.subr.bf16.mxu0 0
  %474 = vmatpush1.bf16.msra.mxu0 %v455
  %475 = vmatprep.subr.bf16.mxu0 0
  %476 = vmatpush1.bf16.msra.mxu0 %v454
  %477 = vmatprep.subr.bf16.mxu0 0
  %478 = vmatpush1.bf16.msra.mxu0 %v453
  %479 = vmatprep.subr.bf16.mxu0 0
  %480 = vmatpush1.bf16.msra.mxu0 %v452
  %481 = vmatprep.subr.bf16.mxu0 0
  %482 = vmatpush1.bf16.msra.mxu0 %v451
  %483 = vmatprep.subr.bf16.mxu0 0
  %484 = vmatpush2.bf16.msra.mxu0 0
  %485 = vmatprep.subr.bf16.mxu0 0
  %486 = vmatpush2.bf16.msra.mxu0 0
  %487 = vmatprep.subr.bf16.mxu0 0
  %488 = vmatpush2.bf16.msra.mxu0 0
  %489 = vmatprep.subr.bf16.mxu0 0
  %490 = vmatpush2.bf16.msra.mxu0 0
  %491 = vmatprep.subr.bf16.mxu0 0
  %492 = vmatpush2.bf16.msra.mxu0 0
  %493 = vmatprep.subr.bf16.mxu0 0
  %494 = vmatpush2.bf16.msra.mxu0 0
  %495 = vmatprep.subr.bf16.mxu0 0
  %496 = vmatpush2.bf16.msra.mxu0 0
  %497 = vmatprep.subr.bf16.mxu0 0
  %498 = vmatpush2.bf16.msra.mxu0 0
  %499 = vmatprep.mubr.bf16.mxu0 0
  %500 = vmatmul.mubr.bf16.gmra.mxu0 %v355
  %v501 = vpop.f32.mrf.mxu0
  %v502 = vadd.f32 0.0, %v501
  %v503 = vpop.f32.mrf.mxu0
  %v504 = vpop.f32.mrf.mxu0
  %v505 = vadd.f32 0.0, %v504
  %v506 = vpop.f32.mrf.mxu0
  %507 = vmatprep.mubr.bf16.mxu0 0
  %508 = vmatmul.mubr.bf16.gmra.mxu0 %v356
  %v509 = vpop.f32.mrf.mxu0
  %v510 = vadd.f32 0.0, %v509
  %v511 = vpop.f32.mrf.mxu0
  %v512 = vpop.f32.mrf.mxu0
  %v513 = vadd.f32 0.0, %v512
  %v514 = vpop.f32.mrf.mxu0
  %515 = vmatprep.mubr.bf16.mxu0 0
  %516 = vmatmul.mubr.bf16.gmra.mxu0 %v357
  %v517 = vpop.f32.mrf.mxu0
  %v518 = vadd.f32 0.0, %v517
  %v519 = vpop.f32.mrf.mxu0
  %v520 = vpop.f32.mrf.mxu0
  %v521 = vadd.f32 0.0, %v520
  %v522 = vpop.f32.mrf.mxu0
  %523 = vmatprep.mubr.bf16.mxu0 0
  %524 = vmatmul.mubr.bf16.gmra.mxu0 %v358
  %v525 = vpop.f32.mrf.mxu0
  %v526 = vadd.f32 0.0, %v525
  %v527 = vpop.f32.mrf.mxu0
  %v528 = vpop.f32.mrf.mxu0
  %v529 = vadd.f32 0.0, %v528
  %v530 = vpop.f32.mrf.mxu0
  %531 = vmatprep.mubr.bf16.mxu0 0
  %532 = vmatmul.mubr.bf16.gmra.mxu0 %v359
  %v533 = vpop.f32.mrf.mxu0
  %v534 = vadd.f32 0.0, %v533
  %v535 = vpop.f32.mrf.mxu0
  %v536 = vpop.f32.mrf.mxu0
  %v537 = vadd.f32 0.0, %v536
  %v538 = vpop.f32.mrf.mxu0
  %539 = vmatprep.mubr.bf16.mxu0 0
  %540 = vmatmul.mubr.bf16.gmra.mxu0 %v360
  %v541 = vpop.f32.mrf.mxu0
  %v542 = vadd.f32 0.0, %v541
  %v543 = vpop.f32.mrf.mxu0
  %v544 = vpop.f32.mrf.mxu0
  %v545 = vadd.f32 0.0, %v544
  %v546 = vpop.f32.mrf.mxu0
  %547 = vmatprep.mubr.bf16.mxu0 0
  %548 = vmatmul.mubr.bf16.gmra.mxu0 %v361
  %v549 = vpop.f32.mrf.mxu0
  %v550 = vadd.f32 0.0, %v549
  %v551 = vpop.f32.mrf.mxu0
  %v552 = vpop.f32.mrf.mxu0
  %v553 = vadd.f32 0.0, %v552
  %v554 = vpop.f32.mrf.mxu0
  %555 = vmatprep.mubr.bf16.mxu0 0
  %556 = vmatmul.mubr.bf16.gmra.mxu0 %v362
  %v557 = vpop.f32.mrf.mxu0
  %v558 = vadd.f32 0.0, %v557
  %v559 = vpop.f32.mrf.mxu0
  %v560 = vpop.f32.mrf.mxu0
  %v561 = vadd.f32 0.0, %v560
  %v562 = vpop.f32.mrf.mxu0
  %563 = vmatprep.mubr.bf16.mxu0 0
  %564 = vmatmul.mubr.bf16.gmra.mxu0 %v363
  %v565 = vpop.f32.mrf.mxu0
  %v566 = vadd.f32 0.0, %v565
  %v567 = vpop.f32.mrf.mxu0
  %v568 = vpop.f32.mrf.mxu0
  %v569 = vadd.f32 0.0, %v568
  %v570 = vpop.f32.mrf.mxu0
  %571 = vmatprep.mubr.bf16.mxu0 0
  %572 = vmatmul.mubr.bf16.gmra.mxu0 %v364
  %v573 = vpop.f32.mrf.mxu0
  %v574 = vadd.f32 0.0, %v573
  %v575 = vpop.f32.mrf.mxu0
  %v576 = vpop.f32.mrf.mxu0
  %v577 = vadd.f32 0.0, %v576
  %v578 = vpop.f32.mrf.mxu0
  %579 = vmatprep.mubr.bf16.mxu0 0
  %580 = vmatmul.mubr.bf16.gmra.mxu0 %v365
  %v581 = vpop.f32.mrf.mxu0
  %v582 = vadd.f32 0.0, %v581
  %v583 = vpop.f32.mrf.mxu0
  %v584 = vpop.f32.mrf.mxu0
  %v585 = vadd.f32 0.0, %v584
  %v586 = vpop.f32.mrf.mxu0
  %587 = vmatprep.mubr.bf16.mxu0 0
  %588 = vmatmul.mubr.bf16.gmra.mxu0 %v366
  %v589 = vpop.f32.mrf.mxu0
  %v590 = vadd.f32 0.0, %v589
  %v591 = vpop.f32.mrf.mxu0
  %v592 = vpop.f32.mrf.mxu0
  %v593 = vadd.f32 0.0, %v592
  %v594 = vpop.f32.mrf.mxu0
  %595 = vmatprep.mubr.bf16.mxu0 0
  %596 = vmatmul.mubr.bf16.gmra.mxu0 %v367
  %v597 = vpop.f32.mrf.mxu0
  %v598 = vadd.f32 0.0, %v597
  %v599 = vpop.f32.mrf.mxu0
  %v600 = vpop.f32.mrf.mxu0
  %v601 = vadd.f32 0.0, %v600
  %v602 = vpop.f32.mrf.mxu0
  %603 = vmatprep.mubr.bf16.mxu0 0
  %604 = vmatmul.mubr.bf16.gmra.mxu0 %v368
  %v605 = vpop.f32.mrf.mxu0
  %v606 = vadd.f32 0.0, %v605
  %v607 = vpop.f32.mrf.mxu0
  %v608 = vpop.f32.mrf.mxu0
  %v609 = vadd.f32 0.0, %v608
  %v610 = vpop.f32.mrf.mxu0
  %611 = vmatprep.mubr.bf16.mxu0 0
  %612 = vmatmul.mubr.bf16.gmra.mxu0 %v369
  %v613 = vpop.f32.mrf.mxu0
  %v614 = vadd.f32 0.0, %v613
  %v615 = vpop.f32.mrf.mxu0
  %v616 = vpop.f32.mrf.mxu0
  %v617 = vadd.f32 0.0, %v616
  %v618 = vpop.f32.mrf.mxu0
  %619 = vmatprep.mubr.bf16.mxu0 0
  %620 = vmatmul.mubr.bf16.gmra.mxu0 %v370
  %v621 = vpop.f32.mrf.mxu0
  %v622 = vadd.f32 0.0, %v621
  %v623 = vpop.f32.mrf.mxu0
  %v624 = vpop.f32.mrf.mxu0
  %v625 = vadd.f32 0.0, %v624
  %v626 = vpop.f32.mrf.mxu0
  %627 = vmatprep.mubr.bf16.mxu0 0
  %628 = vmatmul.mubr.bf16.gmra.mxu0 %v371
  %v629 = vpop.f32.mrf.mxu0
  %v630 = vadd.f32 0.0, %v629
  %v631 = vpop.f32.mrf.mxu0
  %v632 = vpop.f32.mrf.mxu0
  %v633 = vadd.f32 0.0, %v632
  %v634 = vpop.f32.mrf.mxu0
  %635 = vmatprep.mubr.bf16.mxu0 0
  %636 = vmatmul.mubr.bf16.gmra.mxu0 %v372
  %v637 = vpop.f32.mrf.mxu0
  %v638 = vadd.f32 0.0, %v637
  %v639 = vpop.f32.mrf.mxu0
  %v640 = vpop.f32.mrf.mxu0
  %v641 = vadd.f32 0.0, %v640
  %v642 = vpop.f32.mrf.mxu0
  %643 = vmatprep.mubr.bf16.mxu0 0
  %644 = vmatmul.mubr.bf16.gmra.mxu0 %v373
  %v645 = vpop.f32.mrf.mxu0
  %v646 = vadd.f32 0.0, %v645
  %v647 = vpop.f32.mrf.mxu0
  %v648 = vpop.f32.mrf.mxu0
  %v649 = vadd.f32 0.0, %v648
  %v650 = vpop.f32.mrf.mxu0
  %651 = vmatprep.mubr.bf16.mxu0 0
  %652 = vmatmul.mubr.bf16.gmra.mxu0 %v374
  %v653 = vpop.f32.mrf.mxu0
  %v654 = vadd.f32 0.0, %v653
  %v655 = vpop.f32.mrf.mxu0
  %v656 = vpop.f32.mrf.mxu0
  %v657 = vadd.f32 0.0, %v656
  %v658 = vpop.f32.mrf.mxu0
  %659 = vmatprep.mubr.bf16.mxu0 0
  %660 = vmatmul.mubr.bf16.gmra.mxu0 %v375
  %v661 = vpop.f32.mrf.mxu0
  %v662 = vadd.f32 0.0, %v661
  %v663 = vpop.f32.mrf.mxu0
  %v664 = vpop.f32.mrf.mxu0
  %v665 = vadd.f32 0.0, %v664
  %v666 = vpop.f32.mrf.mxu0
  %667 = vmatprep.mubr.bf16.mxu0 0
  %668 = vmatmul.mubr.bf16.gmra.mxu0 %v376
  %v669 = vpop.f32.mrf.mxu0
  %v670 = vadd.f32 0.0, %v669
  %v671 = vpop.f32.mrf.mxu0
  %v672 = vpop.f32.mrf.mxu0
  %v673 = vadd.f32 0.0, %v672
  %v674 = vpop.f32.mrf.mxu0
  %675 = vmatprep.mubr.bf16.mxu0 0
  %676 = vmatmul.mubr.bf16.gmra.mxu0 %v377
  %v677 = vpop.f32.mrf.mxu0
  %v678 = vadd.f32 0.0, %v677
  %v679 = vpop.f32.mrf.mxu0
  %v680 = vpop.f32.mrf.mxu0
  %v681 = vadd.f32 0.0, %v680
  %v682 = vpop.f32.mrf.mxu0
  %683 = vmatprep.mubr.bf16.mxu0 0
  %684 = vmatmul.mubr.bf16.gmra.mxu0 %v378
  %v685 = vpop.f32.mrf.mxu0
  %v686 = vadd.f32 0.0, %v685
  %v687 = vpop.f32.mrf.mxu0
  %v688 = vpop.f32.mrf.mxu0
  %v689 = vadd.f32 0.0, %v688
  %v690 = vpop.f32.mrf.mxu0
  %691 = vmatprep.mubr.bf16.mxu0 0
  %692 = vmatmul.mubr.bf16.gmra.mxu0 %v379
  %v693 = vpop.f32.mrf.mxu0
  %v694 = vadd.f32 0.0, %v693
  %v695 = vpop.f32.mrf.mxu0
  %v696 = vpop.f32.mrf.mxu0
  %v697 = vadd.f32 0.0, %v696
  %v698 = vpop.f32.mrf.mxu0
  %699 = vmatprep.mubr.bf16.mxu0 0
  %700 = vmatmul.mubr.bf16.gmra.mxu0 %v380
  %v701 = vpop.f32.mrf.mxu0
  %v702 = vadd.f32 0.0, %v701
  %v703 = vpop.f32.mrf.mxu0
  %v704 = vpop.f32.mrf.mxu0
  %v705 = vadd.f32 0.0, %v704
  %v706 = vpop.f32.mrf.mxu0
  %707 = vmatprep.mubr.bf16.mxu0 0
  %708 = vmatmul.mubr.bf16.gmra.mxu0 %v381
  %v709 = vpop.f32.mrf.mxu0
  %v710 = vadd.f32 0.0, %v709
  %v711 = vpop.f32.mrf.mxu0
  %v712 = vpop.f32.mrf.mxu0
  %v713 = vadd.f32 0.0, %v712
  %v714 = vpop.f32.mrf.mxu0
  %715 = vmatprep.mubr.bf16.mxu0 0
  %716 = vmatmul.mubr.bf16.gmra.mxu0 %v382
  %v717 = vpop.f32.mrf.mxu0
  %v718 = vadd.f32 0.0, %v717
  %v719 = vpop.f32.mrf.mxu0
  %v720 = vpop.f32.mrf.mxu0
  %v721 = vadd.f32 0.0, %v720
  %v722 = vpop.f32.mrf.mxu0
  %723 = vmatprep.mubr.bf16.mxu0 0
  %724 = vmatmul.mubr.bf16.gmra.mxu0 %v383
  %v725 = vpop.f32.mrf.mxu0
  %v726 = vadd.f32 0.0, %v725
  %v727 = vpop.f32.mrf.mxu0
  %v728 = vpop.f32.mrf.mxu0
  %v729 = vadd.f32 0.0, %v728
  %v730 = vpop.f32.mrf.mxu0
  %731 = vmatprep.mubr.bf16.mxu0 0
  %732 = vmatmul.mubr.bf16.gmra.mxu0 %v384
  %v733 = vpop.f32.mrf.mxu0
  %v734 = vadd.f32 0.0, %v733
  %v735 = vpop.f32.mrf.mxu0
  %v736 = vpop.f32.mrf.mxu0
  %v737 = vadd.f32 0.0, %v736
  %v738 = vpop.f32.mrf.mxu0
  %739 = vmatprep.mubr.bf16.mxu0 0
  %740 = vmatmul.mubr.bf16.gmra.mxu0 %v385
  %v741 = vpop.f32.mrf.mxu0
  %v742 = vadd.f32 0.0, %v741
  %v743 = vpop.f32.mrf.mxu0
  %v744 = vpop.f32.mrf.mxu0
  %v745 = vadd.f32 0.0, %v744
  %v746 = vpop.f32.mrf.mxu0
  %747 = vmatprep.mubr.bf16.mxu0 0
  %748 = vmatmul.mubr.bf16.gmra.mxu0 %v386
  %v749 = vpop.f32.mrf.mxu0
  %v750 = vadd.f32 0.0, %v749
  %v751 = vpop.f32.mrf.mxu0
  %v752 = vpop.f32.mrf.mxu0
  %v753 = vadd.f32 0.0, %v752
  %v754 = vpop.f32.mrf.mxu0
  %755 = vdwg.mxu0
  %v756 = vadd.f32 %v83, %v502
  %v757 = vadd.f32 %v84, %v505
  %v758 = vadd.f32 %v85, %v510
  %v759 = vadd.f32 %v86, %v513
  %v760 = vadd.f32 %v87, %v518
  %v761 = vadd.f32 %v88, %v521
  %v762 = vadd.f32 %v89, %v526
  %v763 = vadd.f32 %v90, %v529
  %v764 = vadd.f32 %v91, %v534
  %v765 = vadd.f32 %v92, %v537
  %v766 = vadd.f32 %v93, %v542
  %v767 = vadd.f32 %v94, %v545
  %v768 = vadd.f32 %v95, %v550
  %v769 = vadd.f32 %v96, %v553
  %v770 = vadd.f32 %v97, %v558
  %v771 = vadd.f32 %v98, %v561
  %v772 = vadd.f32 %v99, %v566
  %v773 = vadd.f32 %v100, %v569
  %v774 = vadd.f32 %v101, %v574
  %v775 = vadd.f32 %v102, %v577
  %v776 = vadd.f32 %v103, %v582
  %v777 = vadd.f32 %v104, %v585
  %v778 = vadd.f32 %v105, %v590
  %v779 = vadd.f32 %v106, %v593
  %v780 = vadd.f32 %v107, %v598
  %v781 = vadd.f32 %v108, %v601
  %v782 = vadd.f32 %v109, %v606
  %v783 = vadd.f32 %v110, %v609
  %v784 = vadd.f32 %v111, %v614
  %v785 = vadd.f32 %v112, %v617
  %v786 = vadd.f32 %v113, %v622
  %v787 = vadd.f32 %v114, %v625
  %v788 = vadd.f32 %v115, %v630
  %v789 = vadd.f32 %v116, %v633
  %v790 = vadd.f32 %v117, %v638
  %v791 = vadd.f32 %v118, %v641
  %v792 = vadd.f32 %v119, %v646
  %v793 = vadd.f32 %v120, %v649
  %v794 = vadd.f32 %v121, %v654
  %v795 = vadd.f32 %v122, %v657
  %v796 = vadd.f32 %v123, %v662
  %v797 = vadd.f32 %v124, %v665
  %v798 = vadd.f32 %v125, %v670
  %v799 = vadd.f32 %v126, %v673
  %v800 = vadd.f32 %v127, %v678
  %v801 = vadd.f32 %v128, %v681
  %v802 = vadd.f32 %v129, %v686
  %v803 = vadd.f32 %v130, %v689
  %v804 = vadd.f32 %v131, %v694
  %v805 = vadd.f32 %v132, %v697
  %v806 = vadd.f32 %v133, %v702
  %v807 = vadd.f32 %v134, %v705
  %v808 = vadd.f32 %v135, %v710
  %v809 = vadd.f32 %v136, %v713
  %v810 = vadd.f32 %v137, %v718
  %v811 = vadd.f32 %v138, %v721
  %v812 = vadd.f32 %v139, %v726
  %v813 = vadd.f32 %v140, %v729
  %v814 = vadd.f32 %v141, %v734
  %v815 = vadd.f32 %v142, %v737
  %v816 = vadd.f32 %v143, %v742
  %v817 = vadd.f32 %v144, %v745
  %v818 = vadd.f32 %v145, %v750
  %v819 = vadd.f32 %v146, %v753
  %820 = vst [vmem:[#allocation2] sm:$0xff] %v756
  %821 = vst [vmem:[#allocation2 + $0x8] sm:$0xff] %v757
  %822 = vst [vmem:[#allocation2 + $0x10] sm:$0xff] %v758
  %823 = vst [vmem:[#allocation2 + $0x18] sm:$0xff] %v759
  %824 = vst [vmem:[#allocation2 + $0x20] sm:$0xff] %v760
  %825 = vst [vmem:[#allocation2 + $0x28] sm:$0xff] %v761
  %826 = vst [vmem:[#allocation2 + $0x30] sm:$0xff] %v762
  %827 = vst [vmem:[#allocation2 + $0x38] sm:$0xff] %v763
  %828 = vst [vmem:[#allocation2 + $0x40] sm:$0xff] %v764
  %829 = vst [vmem:[#allocation2 + $0x48] sm:$0xff] %v765
  %830 = vst [vmem:[#allocation2 + $0x50] sm:$0xff] %v766
  %831 = vst [vmem:[#allocation2 + $0x58] sm:$0xff] %v767
  %832 = vst [vmem:[#allocation2 + $0x60] sm:$0xff] %v768
  %833 = vst [vmem:[#allocation2 + $0x68] sm:$0xff] %v769
  %834 = vst [vmem:[#allocation2 + $0x70] sm:$0xff] %v770
  %835 = vst [vmem:[#allocation2 + $0x78] sm:$0xff] %v771
  %836 = vst [vmem:[#allocation2 + $0x80] sm:$0xff] %v772
  %837 = vst [vmem:[#allocation2 + $0x88] sm:$0xff] %v773
  %838 = vst [vmem:[#allocation2 + $0x90] sm:$0xff] %v774
  %839 = vst [vmem:[#allocation2 + $0x98] sm:$0xff] %v775
  %840 = vst [vmem:[#allocation2 + $0xa0] sm:$0xff] %v776
  %841 = vst [vmem:[#allocation2 + $0xa8] sm:$0xff] %v777
  %842 = vst [vmem:[#allocation2 + $0xb0] sm:$0xff] %v778
  %843 = vst [vmem:[#allocation2 + $0xb8] sm:$0xff] %v779
  %844 = vst [vmem:[#allocation2 + $0xc0] sm:$0xff] %v780
  %845 = vst [vmem:[#allocation2 + $0xc8] sm:$0xff] %v781
  %846 = vst [vmem:[#allocation2 + $0xd0] sm:$0xff] %v782
  %847 = vst [vmem:[#allocation2 + $0xd8] sm:$0xff] %v783
  %848 = vst [vmem:[#allocation2 + $0xe0] sm:$0xff] %v784
  %849 = vst [vmem:[#allocation2 + $0xe8] sm:$0xff] %v785
  %850 = vst [vmem:[#allocation2 + $0xf0] sm:$0xff] %v786
  %851 = vst [vmem:[#allocation2 + $0xf8] sm:$0xff] %v787
  %852 = vst [vmem:[#allocation2 + $0x100] sm:$0xff] %v788
  %853 = vst [vmem:[#allocation2 + $0x108] sm:$0xff] %v789
  %854 = vst [vmem:[#allocation2 + $0x110] sm:$0xff] %v790
  %855 = vst [vmem:[#allocation2 + $0x118] sm:$0xff] %v791
  %856 = vst [vmem:[#allocation2 + $0x120] sm:$0xff] %v792
  %857 = vst [vmem:[#allocation2 + $0x128] sm:$0xff] %v793
  %858 = vst [vmem:[#allocation2 + $0x130] sm:$0xff] %v794
  %859 = vst [vmem:[#allocation2 + $0x138] sm:$0xff] %v795
  %860 = vst [vmem:[#allocation2 + $0x140] sm:$0xff] %v796
  %861 = vst [vmem:[#allocation2 + $0x148] sm:$0xff] %v797
  %862 = vst [vmem:[#allocation2 + $0x150] sm:$0xff] %v798
  %863 = vst [vmem:[#allocation2 + $0x158] sm:$0xff] %v799
  %864 = vst [vmem:[#allocation2 + $0x160] sm:$0xff] %v800
  %865 = vst [vmem:[#allocation2 + $0x168] sm:$0xff] %v801
  %866 = vst [vmem:[#allocation2 + $0x170] sm:$0xff] %v802
  %867 = vst [vmem:[#allocation2 + $0x178] sm:$0xff] %v803
  %868 = vst [vmem:[#allocation2 + $0x180] sm:$0xff] %v804
  %869 = vst [vmem:[#allocation2 + $0x188] sm:$0xff] %v805
  %870 = vst [vmem:[#allocation2 + $0x190] sm:$0xff] %v806
  %871 = vst [vmem:[#allocation2 + $0x198] sm:$0xff] %v807
  %872 = vst [vmem:[#allocation2 + $0x1a0] sm:$0xff] %v808
  %873 = vst [vmem:[#allocation2 + $0x1a8] sm:$0xff] %v809
  %874 = vst [vmem:[#allocation2 + $0x1b0] sm:$0xff] %v810
  %875 = vst [vmem:[#allocation2 + $0x1b8] sm:$0xff] %v811
  %876 = vst [vmem:[#allocation2 + $0x1c0] sm:$0xff] %v812
  %877 = vst [vmem:[#allocation2 + $0x1c8] sm:$0xff] %v813
  %878 = vst [vmem:[#allocation2 + $0x1d0] sm:$0xff] %v814
  %879 = vst [vmem:[#allocation2 + $0x1d8] sm:$0xff] %v815
  %880 = vst [vmem:[#allocation2 + $0x1e0] sm:$0xff] %v816
  %881 = vst [vmem:[#allocation2 + $0x1e8] sm:$0xff] %v817
  %882 = vst [vmem:[#allocation2 + $0x1f0] sm:$0xff] %v818
  %883 = vst [vmem:[#allocation2 + $0x1f8] sm:$0xff] %v819
  // Predicated region
  $region18: #{conv_module_forward.1} parent=0 // pred_check
    %p884 = pneg %p15
  $region19: #{conv_module_forward.1} parent=0 // pred_check_branch
    %886 = sbr.rel (%p884) target = $region21
  $region20: #{conv_module_forward.1} parent=0 // pred_region
    %v887 = vld [vmem:[#allocation2] sm:$0xff]
    %v888 = vld [vmem:[#allocation2 + $0x8] sm:$0xff]
    %v889 = vld [vmem:[#allocation2 + $0x10] sm:$0xff]
    %v890 = vld [vmem:[#allocation2 + $0x18] sm:$0xff]
    %v891 = vld [vmem:[#allocation2 + $0x20] sm:$0xff]
    %v892 = vld [vmem:[#allocation2 + $0x28] sm:$0xff]
    %v893 = vld [vmem:[#allocation2 + $0x30] sm:$0xff]
    %v894 = vld [vmem:[#allocation2 + $0x38] sm:$0xff]
    %v895 = vld [vmem:[#allocation2 + $0x40] sm:$0xff]
    %v896 = vld [vmem:[#allocation2 + $0x48] sm:$0xff]
    %v897 = vld [vmem:[#allocation2 + $0x50] sm:$0xff]
    %v898 = vld [vmem:[#allocation2 + $0x58] sm:$0xff]
    %v899 = vld [vmem:[#allocation2 + $0x60] sm:$0xff]
    %v900 = vld [vmem:[#allocation2 + $0x68] sm:$0xff]
    %v901 = vld [vmem:[#allocation2 + $0x70] sm:$0xff]
    %v902 = vld [vmem:[#allocation2 + $0x78] sm:$0xff]
    %v903 = vld [vmem:[#allocation2 + $0x80] sm:$0xff]
    %v904 = vld [vmem:[#allocation2 + $0x88] sm:$0xff]
    %v905 = vld [vmem:[#allocation2 + $0x90] sm:$0xff]
    %v906 = vld [vmem:[#allocation2 + $0x98] sm:$0xff]
    %v907 = vld [vmem:[#allocation2 + $0xa0] sm:$0xff]
    %v908 = vld [vmem:[#allocation2 + $0xa8] sm:$0xff]
    %v909 = vld [vmem:[#allocation2 + $0xb0] sm:$0xff]
    %v910 = vld [vmem:[#allocation2 + $0xb8] sm:$0xff]
    %v911 = vld [vmem:[#allocation2 + $0xc0] sm:$0xff]
    %v912 = vld [vmem:[#allocation2 + $0xc8] sm:$0xff]
    %v913 = vld [vmem:[#allocation2 + $0xd0] sm:$0xff]
    %v914 = vld [vmem:[#allocation2 + $0xd8] sm:$0xff]
    %v915 = vld [vmem:[#allocation2 + $0xe0] sm:$0xff]
    %v916 = vld [vmem:[#allocation2 + $0xe8] sm:$0xff]
    %v917 = vld [vmem:[#allocation2 + $0xf0] sm:$0xff]
    %v918 = vld [vmem:[#allocation2 + $0xf8] sm:$0xff]
    %v919 = vld [vmem:[#allocation2 + $0x100] sm:$0xff]
    %v920 = vld [vmem:[#allocation2 + $0x108] sm:$0xff]
    %v921 = vld [vmem:[#allocation2 + $0x110] sm:$0xff]
    %v922 = vld [vmem:[#allocation2 + $0x118] sm:$0xff]
    %v923 = vld [vmem:[#allocation2 + $0x120] sm:$0xff]
    %v924 = vld [vmem:[#allocation2 + $0x128] sm:$0xff]
    %v925 = vld [vmem:[#allocation2 + $0x130] sm:$0xff]
    %v926 = vld [vmem:[#allocation2 + $0x138] sm:$0xff]
    %v927 = vld [vmem:[#allocation2 + $0x140] sm:$0xff]
    %v928 = vld [vmem:[#allocation2 + $0x148] sm:$0xff]
    %v929 = vld [vmem:[#allocation2 + $0x150] sm:$0xff]
    %v930 = vld [vmem:[#allocation2 + $0x158] sm:$0xff]
    %v931 = vld [vmem:[#allocation2 + $0x160] sm:$0xff]
    %v932 = vld [vmem:[#allocation2 + $0x168] sm:$0xff]
    %v933 = vld [vmem:[#allocation2 + $0x170] sm:$0xff]
    %v934 = vld [vmem:[#allocation2 + $0x178] sm:$0xff]
    %v935 = vld [vmem:[#allocation2 + $0x180] sm:$0xff]
    %v936 = vld [vmem:[#allocation2 + $0x188] sm:$0xff]
    %v937 = vld [vmem:[#allocation2 + $0x190] sm:$0xff]
    %v938 = vld [vmem:[#allocation2 + $0x198] sm:$0xff]
    %v939 = vld [vmem:[#allocation2 + $0x1a0] sm:$0xff]
    %v940 = vld [vmem:[#allocation2 + $0x1a8] sm:$0xff]
    %v941 = vld [vmem:[#allocation2 + $0x1b0] sm:$0xff]
    %v942 = vld [vmem:[#allocation2 + $0x1b8] sm:$0xff]
    %v943 = vld [vmem:[#allocation2 + $0x1c0] sm:$0xff]
    %v944 = vld [vmem:[#allocation2 + $0x1c8] sm:$0xff]
    %v945 = vld [vmem:[#allocation2 + $0x1d0] sm:$0xff]
    %v946 = vld [vmem:[#allocation2 + $0x1d8] sm:$0xff]
    %v947 = vld [vmem:[#allocation2 + $0x1e0] sm:$0xff]
    %v948 = vld [vmem:[#allocation2 + $0x1e8] sm:$0xff]
    %v949 = vld [vmem:[#allocation2 + $0x1f0] sm:$0xff]
    %v950 = vld [vmem:[#allocation2 + $0x1f8] sm:$0xff]
    %v951 = vld [vmem:[%s2] sm:$0x1]
    %v953 = vlaneseq
    %v954 = vshrl.u32 %v953, 7
    %v955 = vsub.s32 0, %v954
    %v956 = vrot.slane %v951, %v955
    %v958 = vadd.f32 %v887, %v956
    %v959 = vadd.f32 %v888, %v956
    %v960 = vadd.f32 %v889, %v956
    %v961 = vadd.f32 %v890, %v956
    %v962 = vadd.f32 %v891, %v956
    %v963 = vadd.f32 %v892, %v956
    %v964 = vadd.f32 %v893, %v956
    %v965 = vadd.f32 %v894, %v956
    %v966 = vadd.f32 %v895, %v956
    %v967 = vadd.f32 %v896, %v956
    %v968 = vadd.f32 %v897, %v956
    %v969 = vadd.f32 %v898, %v956
    %v970 = vadd.f32 %v899, %v956
    %v971 = vadd.f32 %v900, %v956
    %v972 = vadd.f32 %v901, %v956
    %v973 = vadd.f32 %v902, %v956
    %v974 = vadd.f32 %v903, %v956
    %v975 = vadd.f32 %v904, %v956
    %v976 = vadd.f32 %v905, %v956
    %v977 = vadd.f32 %v906, %v956
    %v978 = vadd.f32 %v907, %v956
    %v979 = vadd.f32 %v908, %v956
    %v980 = vadd.f32 %v909, %v956
    %v981 = vadd.f32 %v910, %v956
    %v982 = vadd.f32 %v911, %v956
    %v983 = vadd.f32 %v912, %v956
    %v984 = vadd.f32 %v913, %v956
    %v985 = vadd.f32 %v914, %v956
    %v986 = vadd.f32 %v915, %v956
    %v987 = vadd.f32 %v916, %v956
    %v988 = vadd.f32 %v917, %v956
    %v989 = vadd.f32 %v918, %v956
    %v990 = vadd.f32 %v919, %v956
    %v991 = vadd.f32 %v920, %v956
    %v992 = vadd.f32 %v921, %v956
    %v993 = vadd.f32 %v922, %v956
    %v994 = vadd.f32 %v923, %v956
    %v995 = vadd.f32 %v924, %v956
    %v996 = vadd.f32 %v925, %v956
    %v997 = vadd.f32 %v926, %v956
    %v998 = vadd.f32 %v927, %v956
    %v999 = vadd.f32 %v928, %v956
    %v1000 = vadd.f32 %v929, %v956
    %v1001 = vadd.f32 %v930, %v956
    %v1002 = vadd.f32 %v931, %v956
    %v1003 = vadd.f32 %v932, %v956
    %v1004 = vadd.f32 %v933, %v956
    %v1005 = vadd.f32 %v934, %v956
    %v1006 = vadd.f32 %v935, %v956
    %v1007 = vadd.f32 %v936, %v956
    %v1008 = vadd.f32 %v937, %v956
    %v1009 = vadd.f32 %v938, %v956
    %v1010 = vadd.f32 %v939, %v956
    %v1011 = vadd.f32 %v940, %v956
    %v1012 = vadd.f32 %v941, %v956
    %v1013 = vadd.f32 %v942, %v956
    %v1014 = vadd.f32 %v943, %v956
    %v1015 = vadd.f32 %v944, %v956
    %v1016 = vadd.f32 %v945, %v956
    %v1017 = vadd.f32 %v946, %v956
    %v1018 = vadd.f32 %v947, %v956
    %v1019 = vadd.f32 %v948, %v956
    %v1020 = vadd.f32 %v949, %v956
    %v1021 = vadd.f32 %v950, %v956
    %v1022 = vxor.u32 %v958, 2147483648
    %v1023 = vxor.u32 %v959, 2147483648
    %v1024 = vxor.u32 %v960, 2147483648
    %v1025 = vxor.u32 %v961, 2147483648
    %v1026 = vxor.u32 %v962, 2147483648
    %v1027 = vxor.u32 %v963, 2147483648
    %v1028 = vxor.u32 %v964, 2147483648
    %v1029 = vxor.u32 %v965, 2147483648
    %v1030 = vxor.u32 %v966, 2147483648
    %v1031 = vxor.u32 %v967, 2147483648
    %v1032 = vxor.u32 %v968, 2147483648
    %v1033 = vxor.u32 %v969, 2147483648
    %v1034 = vxor.u32 %v970, 2147483648
    %v1035 = vxor.u32 %v971, 2147483648
    %v1036 = vxor.u32 %v972, 2147483648
    %v1037 = vxor.u32 %v973, 2147483648
    %v1038 = vxor.u32 %v974, 2147483648
    %v1039 = vxor.u32 %v975, 2147483648
    %v1040 = vxor.u32 %v976, 2147483648
    %v1041 = vxor.u32 %v977, 2147483648
    %v1042 = vxor.u32 %v978, 2147483648
    %v1043 = vxor.u32 %v979, 2147483648
    %v1044 = vxor.u32 %v980, 2147483648
    %v1045 = vxor.u32 %v981, 2147483648
    %v1046 = vxor.u32 %v982, 2147483648
    %v1047 = vxor.u32 %v983, 2147483648
    %v1048 = vxor.u32 %v984, 2147483648
    %v1049 = vxor.u32 %v985, 2147483648
    %v1050 = vxor.u32 %v986, 2147483648
    %v1051 = vxor.u32 %v987, 2147483648
    %v1052 = vxor.u32 %v988, 2147483648
    %v1053 = vxor.u32 %v989, 2147483648
    %v1054 = vxor.u32 %v990, 2147483648
    %v1055 = vxor.u32 %v991, 2147483648
    %v1056 = vxor.u32 %v992, 2147483648
    %v1057 = vxor.u32 %v993, 2147483648
    %v1058 = vxor.u32 %v994, 2147483648
    %v1059 = vxor.u32 %v995, 2147483648
    %v1060 = vxor.u32 %v996, 2147483648
    %v1061 = vxor.u32 %v997, 2147483648
    %v1062 = vxor.u32 %v998, 2147483648
    %v1063 = vxor.u32 %v999, 2147483648
    %v1064 = vxor.u32 %v1000, 2147483648
    %v1065 = vxor.u32 %v1001, 2147483648
    %v1066 = vxor.u32 %v1002, 2147483648
    %v1067 = vxor.u32 %v1003, 2147483648
    %v1068 = vxor.u32 %v1004, 2147483648
    %v1069 = vxor.u32 %v1005, 2147483648
    %v1070 = vxor.u32 %v1006, 2147483648
    %v1071 = vxor.u32 %v1007, 2147483648
    %v1072 = vxor.u32 %v1008, 2147483648
    %v1073 = vxor.u32 %v1009, 2147483648
    %v1074 = vxor.u32 %v1010, 2147483648
    %v1075 = vxor.u32 %v1011, 2147483648
    %v1076 = vxor.u32 %v1012, 2147483648
    %v1077 = vxor.u32 %v1013, 2147483648
    %v1078 = vxor.u32 %v1014, 2147483648
    %v1079 = vxor.u32 %v1015, 2147483648
    %v1080 = vxor.u32 %v1016, 2147483648
    %v1081 = vxor.u32 %v1017, 2147483648
    %v1082 = vxor.u32 %v1018, 2147483648
    %v1083 = vxor.u32 %v1019, 2147483648
    %v1084 = vxor.u32 %v1020, 2147483648
    %v1085 = vxor.u32 %v1021, 2147483648
    %v1086 = vmul.f32 %v1022, 1.442695
    %v1087 = vpow.pop %v1086
    %v1088 = vmul.f32 %v1023, 1.442695
    %v1089 = vpow.pop %v1088
    %v1090 = vmul.f32 %v1024, 1.442695
    %v1091 = vpow.pop %v1090
    %v1092 = vmul.f32 %v1025, 1.442695
    %v1093 = vpow.pop %v1092
    %v1094 = vmul.f32 %v1026, 1.442695
    %v1095 = vpow.pop %v1094
    %v1096 = vmul.f32 %v1027, 1.442695
    %v1097 = vpow.pop %v1096
    %v1098 = vmul.f32 %v1028, 1.442695
    %v1099 = vpow.pop %v1098
    %v1100 = vmul.f32 %v1029, 1.442695
    %v1101 = vpow.pop %v1100
    %v1102 = vmul.f32 %v1030, 1.442695
    %v1103 = vpow.pop %v1102
    %v1104 = vmul.f32 %v1031, 1.442695
    %v1105 = vpow.pop %v1104
    %v1106 = vmul.f32 %v1032, 1.442695
    %v1107 = vpow.pop %v1106
    %v1108 = vmul.f32 %v1033, 1.442695
    %v1109 = vpow.pop %v1108
    %v1110 = vmul.f32 %v1034, 1.442695
    %v1111 = vpow.pop %v1110
    %v1112 = vmul.f32 %v1035, 1.442695
    %v1113 = vpow.pop %v1112
    %v1114 = vmul.f32 %v1036, 1.442695
    %v1115 = vpow.pop %v1114
    %v1116 = vmul.f32 %v1037, 1.442695
    %v1117 = vpow.pop %v1116
    %v1118 = vmul.f32 %v1038, 1.442695
    %v1119 = vpow.pop %v1118
    %v1120 = vmul.f32 %v1039, 1.442695
    %v1121 = vpow.pop %v1120
    %v1122 = vmul.f32 %v1040, 1.442695
    %v1123 = vpow.pop %v1122
    %v1124 = vmul.f32 %v1041, 1.442695
    %v1125 = vpow.pop %v1124
    %v1126 = vmul.f32 %v1042, 1.442695
    %v1127 = vpow.pop %v1126
    %v1128 = vmul.f32 %v1043, 1.442695
    %v1129 = vpow.pop %v1128
    %v1130 = vmul.f32 %v1044, 1.442695
    %v1131 = vpow.pop %v1130
    %v1132 = vmul.f32 %v1045, 1.442695
    %v1133 = vpow.pop %v1132
    %v1134 = vmul.f32 %v1046, 1.442695
    %v1135 = vpow.pop %v1134
    %v1136 = vmul.f32 %v1047, 1.442695
    %v1137 = vpow.pop %v1136
    %v1138 = vmul.f32 %v1048, 1.442695
    %v1139 = vpow.pop %v1138
    %v1140 = vmul.f32 %v1049, 1.442695
    %v1141 = vpow.pop %v1140
    %v1142 = vmul.f32 %v1050, 1.442695
    %v1143 = vpow.pop %v1142
    %v1144 = vmul.f32 %v1051, 1.442695
    %v1145 = vpow.pop %v1144
    %v1146 = vmul.f32 %v1052, 1.442695
    %v1147 = vpow.pop %v1146
    %v1148 = vmul.f32 %v1053, 1.442695
    %v1149 = vpow.pop %v1148
    %v1150 = vmul.f32 %v1054, 1.442695
    %v1151 = vpow.pop %v1150
    %v1152 = vmul.f32 %v1055, 1.442695
    %v1153 = vpow.pop %v1152
    %v1154 = vmul.f32 %v1056, 1.442695
    %v1155 = vpow.pop %v1154
    %v1156 = vmul.f32 %v1057, 1.442695
    %v1157 = vpow.pop %v1156
    %v1158 = vmul.f32 %v1058, 1.442695
    %v1159 = vpow.pop %v1158
    %v1160 = vmul.f32 %v1059, 1.442695
    %v1161 = vpow.pop %v1160
    %v1162 = vmul.f32 %v1060, 1.442695
    %v1163 = vpow.pop %v1162
    %v1164 = vmul.f32 %v1061, 1.442695
    %v1165 = vpow.pop %v1164
    %v1166 = vmul.f32 %v1062, 1.442695
    %v1167 = vpow.pop %v1166
    %v1168 = vmul.f32 %v1063, 1.442695
    %v1169 = vpow.pop %v1168
    %v1170 = vmul.f32 %v1064, 1.442695
    %v1171 = vpow.pop %v1170
    %v1172 = vmul.f32 %v1065, 1.442695
    %v1173 = vpow.pop %v1172
    %v1174 = vmul.f32 %v1066, 1.442695
    %v1175 = vpow.pop %v1174
    %v1176 = vmul.f32 %v1067, 1.442695
    %v1177 = vpow.pop %v1176
    %v1178 = vmul.f32 %v1068, 1.442695
    %v1179 = vpow.pop %v1178
    %v1180 = vmul.f32 %v1069, 1.442695
    %v1181 = vpow.pop %v1180
    %v1182 = vmul.f32 %v1070, 1.442695
    %v1183 = vpow.pop %v1182
    %v1184 = vmul.f32 %v1071, 1.442695
    %v1185 = vpow.pop %v1184
    %v1186 = vmul.f32 %v1072, 1.442695
    %v1187 = vpow.pop %v1186
    %v1188 = vmul.f32 %v1073, 1.442695
    %v1189 = vpow.pop %v1188
    %v1190 = vmul.f32 %v1074, 1.442695
    %v1191 = vpow.pop %v1190
    %v1192 = vmul.f32 %v1075, 1.442695
    %v1193 = vpow.pop %v1192
    %v1194 = vmul.f32 %v1076, 1.442695
    %v1195 = vpow.pop %v1194
    %v1196 = vmul.f32 %v1077, 1.442695
    %v1197 = vpow.pop %v1196
    %v1198 = vmul.f32 %v1078, 1.442695
    %v1199 = vpow.pop %v1198
    %v1200 = vmul.f32 %v1079, 1.442695
    %v1201 = vpow.pop %v1200
    %v1202 = vmul.f32 %v1080, 1.442695
    %v1203 = vpow.pop %v1202
    %v1204 = vmul.f32 %v1081, 1.442695
    %v1205 = vpow.pop %v1204
    %v1206 = vmul.f32 %v1082, 1.442695
    %v1207 = vpow.pop %v1206
    %v1208 = vmul.f32 %v1083, 1.442695
    %v1209 = vpow.pop %v1208
    %v1210 = vmul.f32 %v1084, 1.442695
    %v1211 = vpow.pop %v1210
    %v1212 = vmul.f32 %v1085, 1.442695
    %v1213 = vpow.pop %v1212
    %v1214 = vadd.f32 %v1087, 1.0
    %v1215 = vadd.f32 %v1089, 1.0
    %v1216 = vadd.f32 %v1091, 1.0
    %v1217 = vadd.f32 %v1093, 1.0
    %v1218 = vadd.f32 %v1095, 1.0
    %v1219 = vadd.f32 %v1097, 1.0
    %v1220 = vadd.f32 %v1099, 1.0
    %v1221 = vadd.f32 %v1101, 1.0
    %v1222 = vadd.f32 %v1103, 1.0
    %v1223 = vadd.f32 %v1105, 1.0
    %v1224 = vadd.f32 %v1107, 1.0
    %v1225 = vadd.f32 %v1109, 1.0
    %v1226 = vadd.f32 %v1111, 1.0
    %v1227 = vadd.f32 %v1113, 1.0
    %v1228 = vadd.f32 %v1115, 1.0
    %v1229 = vadd.f32 %v1117, 1.0
    %v1230 = vadd.f32 %v1119, 1.0
    %v1231 = vadd.f32 %v1121, 1.0
    %v1232 = vadd.f32 %v1123, 1.0
    %v1233 = vadd.f32 %v1125, 1.0
    %v1234 = vadd.f32 %v1127, 1.0
    %v1235 = vadd.f32 %v1129, 1.0
    %v1236 = vadd.f32 %v1131, 1.0
    %v1237 = vadd.f32 %v1133, 1.0
    %v1238 = vadd.f32 %v1135, 1.0
    %v1239 = vadd.f32 %v1137, 1.0
    %v1240 = vadd.f32 %v1139, 1.0
    %v1241 = vadd.f32 %v1141, 1.0
    %v1242 = vadd.f32 %v1143, 1.0
    %v1243 = vadd.f32 %v1145, 1.0
    %v1244 = vadd.f32 %v1147, 1.0
    %v1245 = vadd.f32 %v1149, 1.0
    %v1246 = vadd.f32 %v1151, 1.0
    %v1247 = vadd.f32 %v1153, 1.0
    %v1248 = vadd.f32 %v1155, 1.0
    %v1249 = vadd.f32 %v1157, 1.0
    %v1250 = vadd.f32 %v1159, 1.0
    %v1251 = vadd.f32 %v1161, 1.0
    %v1252 = vadd.f32 %v1163, 1.0
    %v1253 = vadd.f32 %v1165, 1.0
    %v1254 = vadd.f32 %v1167, 1.0
    %v1255 = vadd.f32 %v1169, 1.0
    %v1256 = vadd.f32 %v1171, 1.0
    %v1257 = vadd.f32 %v1173, 1.0
    %v1258 = vadd.f32 %v1175, 1.0
    %v1259 = vadd.f32 %v1177, 1.0
    %v1260 = vadd.f32 %v1179, 1.0
    %v1261 = vadd.f32 %v1181, 1.0
    %v1262 = vadd.f32 %v1183, 1.0
    %v1263 = vadd.f32 %v1185, 1.0
    %v1264 = vadd.f32 %v1187, 1.0
    %v1265 = vadd.f32 %v1189, 1.0
    %v1266 = vadd.f32 %v1191, 1.0
    %v1267 = vadd.f32 %v1193, 1.0
    %v1268 = vadd.f32 %v1195, 1.0
    %v1269 = vadd.f32 %v1197, 1.0
    %v1270 = vadd.f32 %v1199, 1.0
    %v1271 = vadd.f32 %v1201, 1.0
    %v1272 = vadd.f32 %v1203, 1.0
    %v1273 = vadd.f32 %v1205, 1.0
    %v1274 = vadd.f32 %v1207, 1.0
    %v1275 = vadd.f32 %v1209, 1.0
    %v1276 = vadd.f32 %v1211, 1.0
    %v1277 = vadd.f32 %v1213, 1.0
    %v1278 = vrcp.pop %v1214
    %v1279 = vmul.f32 1.0, %v1278
    %v1280 = vrcp.pop %v1215
    %v1281 = vmul.f32 1.0, %v1280
    %v1282 = vrcp.pop %v1216
    %v1283 = vmul.f32 1.0, %v1282
    %v1284 = vrcp.pop %v1217
    %v1285 = vmul.f32 1.0, %v1284
    %v1286 = vrcp.pop %v1218
    %v1287 = vmul.f32 1.0, %v1286
    %v1288 = vrcp.pop %v1219
    %v1289 = vmul.f32 1.0, %v1288
    %v1290 = vrcp.pop %v1220
    %v1291 = vmul.f32 1.0, %v1290
    %v1292 = vrcp.pop %v1221
    %v1293 = vmul.f32 1.0, %v1292
    %v1294 = vrcp.pop %v1222
    %v1295 = vmul.f32 1.0, %v1294
    %v1296 = vrcp.pop %v1223
    %v1297 = vmul.f32 1.0, %v1296
    %v1298 = vrcp.pop %v1224
    %v1299 = vmul.f32 1.0, %v1298
    %v1300 = vrcp.pop %v1225
    %v1301 = vmul.f32 1.0, %v1300
    %v1302 = vrcp.pop %v1226
    %v1303 = vmul.f32 1.0, %v1302
    %v1304 = vrcp.pop %v1227
    %v1305 = vmul.f32 1.0, %v1304
    %v1306 = vrcp.pop %v1228
    %v1307 = vmul.f32 1.0, %v1306
    %v1308 = vrcp.pop %v1229
    %v1309 = vmul.f32 1.0, %v1308
    %v1310 = vrcp.pop %v1230
    %v1311 = vmul.f32 1.0, %v1310
    %v1312 = vrcp.pop %v1231
    %v1313 = vmul.f32 1.0, %v1312
    %v1314 = vrcp.pop %v1232
    %v1315 = vmul.f32 1.0, %v1314
    %v1316 = vrcp.pop %v1233
    %v1317 = vmul.f32 1.0, %v1316
    %v1318 = vrcp.pop %v1234
    %v1319 = vmul.f32 1.0, %v1318
    %v1320 = vrcp.pop %v1235
    %v1321 = vmul.f32 1.0, %v1320
    %v1322 = vrcp.pop %v1236
    %v1323 = vmul.f32 1.0, %v1322
    %v1324 = vrcp.pop %v1237
    %v1325 = vmul.f32 1.0, %v1324
    %v1326 = vrcp.pop %v1238
    %v1327 = vmul.f32 1.0, %v1326
    %v1328 = vrcp.pop %v1239
    %v1329 = vmul.f32 1.0, %v1328
    %v1330 = vrcp.pop %v1240
    %v1331 = vmul.f32 1.0, %v1330
    %v1332 = vrcp.pop %v1241
    %v1333 = vmul.f32 1.0, %v1332
    %v1334 = vrcp.pop %v1242
    %v1335 = vmul.f32 1.0, %v1334
    %v1336 = vrcp.pop %v1243
    %v1337 = vmul.f32 1.0, %v1336
    %v1338 = vrcp.pop %v1244
    %v1339 = vmul.f32 1.0, %v1338
    %v1340 = vrcp.pop %v1245
    %v1341 = vmul.f32 1.0, %v1340
    %v1342 = vrcp.pop %v1246
    %v1343 = vmul.f32 1.0, %v1342
    %v1344 = vrcp.pop %v1247
    %v1345 = vmul.f32 1.0, %v1344
    %v1346 = vrcp.pop %v1248
    %v1347 = vmul.f32 1.0, %v1346
    %v1348 = vrcp.pop %v1249
    %v1349 = vmul.f32 1.0, %v1348
    %v1350 = vrcp.pop %v1250
    %v1351 = vmul.f32 1.0, %v1350
    %v1352 = vrcp.pop %v1251
    %v1353 = vmul.f32 1.0, %v1352
    %v1354 = vrcp.pop %v1252
    %v1355 = vmul.f32 1.0, %v1354
    %v1356 = vrcp.pop %v1253
    %v1357 = vmul.f32 1.0, %v1356
    %v1358 = vrcp.pop %v1254
    %v1359 = vmul.f32 1.0, %v1358
    %v1360 = vrcp.pop %v1255
    %v1361 = vmul.f32 1.0, %v1360
    %v1362 = vrcp.pop %v1256
    %v1363 = vmul.f32 1.0, %v1362
    %v1364 = vrcp.pop %v1257
    %v1365 = vmul.f32 1.0, %v1364
    %v1366 = vrcp.pop %v1258
    %v1367 = vmul.f32 1.0, %v1366
    %v1368 = vrcp.pop %v1259
    %v1369 = vmul.f32 1.0, %v1368
    %v1370 = vrcp.pop %v1260
    %v1371 = vmul.f32 1.0, %v1370
    %v1372 = vrcp.pop %v1261
    %v1373 = vmul.f32 1.0, %v1372
    %v1374 = vrcp.pop %v1262
    %v1375 = vmul.f32 1.0, %v1374
    %v1376 = vrcp.pop %v1263
    %v1377 = vmul.f32 1.0, %v1376
    %v1378 = vrcp.pop %v1264
    %v1379 = vmul.f32 1.0, %v1378
    %v1380 = vrcp.pop %v1265
    %v1381 = vmul.f32 1.0, %v1380
    %v1382 = vrcp.pop %v1266
    %v1383 = vmul.f32 1.0, %v1382
    %v1384 = vrcp.pop %v1267
    %v1385 = vmul.f32 1.0, %v1384
    %v1386 = vrcp.pop %v1268
    %v1387 = vmul.f32 1.0, %v1386
    %v1388 = vrcp.pop %v1269
    %v1389 = vmul.f32 1.0, %v1388
    %v1390 = vrcp.pop %v1270
    %v1391 = vmul.f32 1.0, %v1390
    %v1392 = vrcp.pop %v1271
    %v1393 = vmul.f32 1.0, %v1392
    %v1394 = vrcp.pop %v1272
    %v1395 = vmul.f32 1.0, %v1394
    %v1396 = vrcp.pop %v1273
    %v1397 = vmul.f32 1.0, %v1396
    %v1398 = vrcp.pop %v1274
    %v1399 = vmul.f32 1.0, %v1398
    %v1400 = vrcp.pop %v1275
    %v1401 = vmul.f32 1.0, %v1400
    %v1402 = vrcp.pop %v1276
    %v1403 = vmul.f32 1.0, %v1402
    %v1404 = vrcp.pop %v1277
    %v1405 = vmul.f32 1.0, %v1404
    %v1406 = vmul.f32 %v958, %v1279
    %v1407 = vmul.f32 %v959, %v1281
    %v1408 = vmul.f32 %v960, %v1283
    %v1409 = vmul.f32 %v961, %v1285
    %v1410 = vmul.f32 %v962, %v1287
    %v1411 = vmul.f32 %v963, %v1289
    %v1412 = vmul.f32 %v964, %v1291
    %v1413 = vmul.f32 %v965, %v1293
    %v1414 = vmul.f32 %v966, %v1295
    %v1415 = vmul.f32 %v967, %v1297
    %v1416 = vmul.f32 %v968, %v1299
    %v1417 = vmul.f32 %v969, %v1301
    %v1418 = vmul.f32 %v970, %v1303
    %v1419 = vmul.f32 %v971, %v1305
    %v1420 = vmul.f32 %v972, %v1307
    %v1421 = vmul.f32 %v973, %v1309
    %v1422 = vmul.f32 %v974, %v1311
    %v1423 = vmul.f32 %v975, %v1313
    %v1424 = vmul.f32 %v976, %v1315
    %v1425 = vmul.f32 %v977, %v1317
    %v1426 = vmul.f32 %v978, %v1319
    %v1427 = vmul.f32 %v979, %v1321
    %v1428 = vmul.f32 %v980, %v1323
    %v1429 = vmul.f32 %v981, %v1325
    %v1430 = vmul.f32 %v982, %v1327
    %v1431 = vmul.f32 %v983, %v1329
    %v1432 = vmul.f32 %v984, %v1331
    %v1433 = vmul.f32 %v985, %v1333
    %v1434 = vmul.f32 %v986, %v1335
    %v1435 = vmul.f32 %v987, %v1337
    %v1436 = vmul.f32 %v988, %v1339
    %v1437 = vmul.f32 %v989, %v1341
    %v1438 = vmul.f32 %v990, %v1343
    %v1439 = vmul.f32 %v991, %v1345
    %v1440 = vmul.f32 %v992, %v1347
    %v1441 = vmul.f32 %v993, %v1349
    %v1442 = vmul.f32 %v994, %v1351
    %v1443 = vmul.f32 %v995, %v1353
    %v1444 = vmul.f32 %v996, %v1355
    %v1445 = vmul.f32 %v997, %v1357
    %v1446 = vmul.f32 %v998, %v1359
    %v1447 = vmul.f32 %v999, %v1361
    %v1448 = vmul.f32 %v1000, %v1363
    %v1449 = vmul.f32 %v1001, %v1365
    %v1450 = vmul.f32 %v1002, %v1367
    %v1451 = vmul.f32 %v1003, %v1369
    %v1452 = vmul.f32 %v1004, %v1371
    %v1453 = vmul.f32 %v1005, %v1373
    %v1454 = vmul.f32 %v1006, %v1375
    %v1455 = vmul.f32 %v1007, %v1377
    %v1456 = vmul.f32 %v1008, %v1379
    %v1457 = vmul.f32 %v1009, %v1381
    %v1458 = vmul.f32 %v1010, %v1383
    %v1459 = vmul.f32 %v1011, %v1385
    %v1460 = vmul.f32 %v1012, %v1387
    %v1461 = vmul.f32 %v1013, %v1389
    %v1462 = vmul.f32 %v1014, %v1391
    %v1463 = vmul.f32 %v1015, %v1393
    %v1464 = vmul.f32 %v1016, %v1395
    %v1465 = vmul.f32 %v1017, %v1397
    %v1466 = vmul.f32 %v1018, %v1399
    %v1467 = vmul.f32 %v1019, %v1401
    %v1468 = vmul.f32 %v1020, %v1403
    %v1469 = vmul.f32 %v1021, %v1405
    %1470 = vst [vmem:[%s3] sm:$0xff] %v1406
    %1471 = vst [vmem:[%s3 + $0x8] sm:$0xff] %v1407
    %1472 = vst [vmem:[%s3 + $0x10] sm:$0xff] %v1408
    %1473 = vst [vmem:[%s3 + $0x18] sm:$0xff] %v1409
    %1474 = vst [vmem:[%s3 + $0x20] sm:$0xff] %v1410
    %1475 = vst [vmem:[%s3 + $0x28] sm:$0xff] %v1411
    %1476 = vst [vmem:[%s3 + $0x30] sm:$0xff] %v1412
    %1477 = vst [vmem:[%s3 + $0x38] sm:$0xff] %v1413
    %1478 = vst [vmem:[%s3 + $0x40] sm:$0xff] %v1414
    %1479 = vst [vmem:[%s3 + $0x48] sm:$0xff] %v1415
    %1480 = vst [vmem:[%s3 + $0x50] sm:$0xff] %v1416
    %1481 = vst [vmem:[%s3 + $0x58] sm:$0xff] %v1417
    %1482 = vst [vmem:[%s3 + $0x60] sm:$0xff] %v1418
    %1483 = vst [vmem:[%s3 + $0x68] sm:$0xff] %v1419
    %1484 = vst [vmem:[%s3 + $0x70] sm:$0xff] %v1420
    %1485 = vst [vmem:[%s3 + $0x78] sm:$0xff] %v1421
    %1486 = vst [vmem:[%s3 + $0x80] sm:$0xff] %v1422
    %1487 = vst [vmem:[%s3 + $0x88] sm:$0xff] %v1423
    %1488 = vst [vmem:[%s3 + $0x90] sm:$0xff] %v1424
    %1489 = vst [vmem:[%s3 + $0x98] sm:$0xff] %v1425
    %1490 = vst [vmem:[%s3 + $0xa0] sm:$0xff] %v1426
    %1491 = vst [vmem:[%s3 + $0xa8] sm:$0xff] %v1427
    %1492 = vst [vmem:[%s3 + $0xb0] sm:$0xff] %v1428
    %1493 = vst [vmem:[%s3 + $0xb8] sm:$0xff] %v1429
    %1494 = vst [vmem:[%s3 + $0xc0] sm:$0xff] %v1430
    %1495 = vst [vmem:[%s3 + $0xc8] sm:$0xff] %v1431
    %1496 = vst [vmem:[%s3 + $0xd0] sm:$0xff] %v1432
    %1497 = vst [vmem:[%s3 + $0xd8] sm:$0xff] %v1433
    %1498 = vst [vmem:[%s3 + $0xe0] sm:$0xff] %v1434
    %1499 = vst [vmem:[%s3 + $0xe8] sm:$0xff] %v1435
    %1500 = vst [vmem:[%s3 + $0xf0] sm:$0xff] %v1436
    %1501 = vst [vmem:[%s3 + $0xf8] sm:$0xff] %v1437
    %1502 = vst [vmem:[%s3 + $0x100] sm:$0xff] %v1438
    %1503 = vst [vmem:[%s3 + $0x108] sm:$0xff] %v1439
    %1504 = vst [vmem:[%s3 + $0x110] sm:$0xff] %v1440
    %1505 = vst [vmem:[%s3 + $0x118] sm:$0xff] %v1441
    %1506 = vst [vmem:[%s3 + $0x120] sm:$0xff] %v1442
    %1507 = vst [vmem:[%s3 + $0x128] sm:$0xff] %v1443
    %1508 = vst [vmem:[%s3 + $0x130] sm:$0xff] %v1444
    %1509 = vst [vmem:[%s3 + $0x138] sm:$0xff] %v1445
    %1510 = vst [vmem:[%s3 + $0x140] sm:$0xff] %v1446
    %1511 = vst [vmem:[%s3 + $0x148] sm:$0xff] %v1447
    %1512 = vst [vmem:[%s3 + $0x150] sm:$0xff] %v1448
    %1513 = vst [vmem:[%s3 + $0x158] sm:$0xff] %v1449
    %1514 = vst [vmem:[%s3 + $0x160] sm:$0xff] %v1450
    %1515 = vst [vmem:[%s3 + $0x168] sm:$0xff] %v1451
    %1516 = vst [vmem:[%s3 + $0x170] sm:$0xff] %v1452
    %1517 = vst [vmem:[%s3 + $0x178] sm:$0xff] %v1453
    %1518 = vst [vmem:[%s3 + $0x180] sm:$0xff] %v1454
    %1519 = vst [vmem:[%s3 + $0x188] sm:$0xff] %v1455
    %1520 = vst [vmem:[%s3 + $0x190] sm:$0xff] %v1456
    %1521 = vst [vmem:[%s3 + $0x198] sm:$0xff] %v1457
    %1522 = vst [vmem:[%s3 + $0x1a0] sm:$0xff] %v1458
    %1523 = vst [vmem:[%s3 + $0x1a8] sm:$0xff] %v1459
    %1524 = vst [vmem:[%s3 + $0x1b0] sm:$0xff] %v1460
    %1525 = vst [vmem:[%s3 + $0x1b8] sm:$0xff] %v1461
    %1526 = vst [vmem:[%s3 + $0x1c0] sm:$0xff] %v1462
    %1527 = vst [vmem:[%s3 + $0x1c8] sm:$0xff] %v1463
    %1528 = vst [vmem:[%s3 + $0x1d0] sm:$0xff] %v1464
    %1529 = vst [vmem:[%s3 + $0x1d8] sm:$0xff] %v1465
    %1530 = vst [vmem:[%s3 + $0x1e0] sm:$0xff] %v1466
    %1531 = vst [vmem:[%s3 + $0x1e8] sm:$0xff] %v1467
    %1532 = vst [vmem:[%s3 + $0x1f0] sm:$0xff] %v1468
    %1533 = vst [vmem:[%s3 + $0x1f8] sm:$0xff] %v1469
  $region21: #{conv_module_forward.1} parent=0 // pred_fallthru
    _
  // Predicated region
  $region22: #{conv_module_forward.1} parent=0 // pred_check
    _
  $region23: #{conv_module_forward.1} parent=0 // pred_check_branch
    %1535 = sbr.rel (0) target = $region25
  $region24: #{conv_module_forward.1} parent=0 // pred_region
    _
  $region25: #{conv_module_forward.1} parent=0 // pred_fallthru
    _
  // Predicated region
  $region26: #{conv_module_forward.1} parent=0 // pred_check
    _
  $region27: #{conv_module_forward.1} parent=0 // pred_check_branch
    %1537 = sbr.rel (0) target = $region29
  $region28: #{conv_module_forward.1} parent=0 // pred_region
    _
  $region29: #{conv_module_forward.1} parent=0 // pred_fallthru
    _

</llo_original>
